<compile_context>
chip_gen: v7x
topology: tpu7x:2x2x1
jax: 0.10.0
libtpu: 0.0.40
codegen_flags: <defaults>
</compile_context>

<pallas_src>
import functools

import jax
import jax.numpy as jnp
from jax import lax
from jax.experimental import pallas as pl
from jax.experimental.pallas import tpu as pltpu

_EPS = 1e-5
# Scoped-VMEM request: far above the ~3 MiB per-tile footprint, raises v5e's
# 16 MiB default, and stays well inside v7x's 64 MiB physical VMEM.
_VMEM_LIMIT_BYTES = 32 * 1024 * 1024


def _round_up(x, m):
    return (x + m - 1) // m * m


# ---------------------------------------------------------------------------
# Kernel bodies
# ---------------------------------------------------------------------------

def _linear_relu(h, w_ref, b_ref):
    """ReLU(h @ W + b) with bf16 MXU operands and f32 accumulation/epilogue."""
    out = jnp.dot(h.astype(jnp.bfloat16), w_ref[...],
                  preferred_element_type=jnp.float32)
    return jnp.maximum(out + b_ref[...], 0.0)


def _masked_stats_update(h, n_valid, sum_ref, sq_ref):
    """Accumulate sum / sum-of-squares of the valid rows of this tile into the
    VMEM-resident (1, C) accumulators (batch grid axis is "arbitrary")."""
    step = pl.program_id(0)

    @pl.when(step == 0)
    def _init():
        sum_ref[...] = jnp.zeros_like(sum_ref)
        sq_ref[...] = jnp.zeros_like(sq_ref)

    tile = h.shape[0]
    row = step * tile + lax.broadcasted_iota(jnp.int32, (tile, 1), 0)
    h = jnp.where(row < n_valid, h, 0.0)          # drop padded rows from stats
    sum_ref[...] += jnp.sum(h, axis=0, keepdims=True)
    sq_ref[...] += jnp.sum(h * h, axis=0, keepdims=True)


def _stage_a_kernel(n_valid, x_ref, w1_ref, b1_ref, sum_ref, sq_ref):
    h1 = _linear_relu(x_ref[...], w1_ref, b1_ref)
    _masked_stats_update(h1, n_valid, sum_ref, sq_ref)


def _stage_b_kernel(n_valid, x_ref, w1_ref, b1_ref, w2_ref, b2_ref,
                    sum_ref, sq_ref):
    h1 = _linear_relu(x_ref[...], w1_ref, b1_ref)
    h2 = _linear_relu(h1, w2_ref, b2_ref)
    _masked_stats_update(h2, n_valid, sum_ref, sq_ref)


def _stage_c_kernel(x_ref, w1_ref, b1_ref, w2_ref, b2_ref, w3_ref, b3_ref,
                    o_ref):
    h1 = _linear_relu(x_ref[...], w1_ref, b1_ref)
    h2 = _linear_relu(h1, w2_ref, b2_ref)
    o_ref[...] = _linear_relu(h2, w3_ref, b3_ref)


# ---------------------------------------------------------------------------
# Parameter packing & BN-fold helper (shared by the wrapper and the reference)
# ---------------------------------------------------------------------------

def pack_params(p):
    """One-time prep: bf16 copy of W1, zero-padded to a 128-row contraction so
    every matmul is MXU-tile aligned.  W2/W3 stay as f32 masters: they are
    re-scaled by the runtime BatchNorm fold and cast to bf16 per call."""
    w1 = p["w1"]
    c_in, c1 = w1.shape
    k_pad = _round_up(c_in, 128)
    w1_p = jnp.zeros((k_pad, c1), jnp.bfloat16).at[:c_in, :].set(
        w1.astype(jnp.bfloat16))
    packed = dict(p)
    packed["w1"] = w1_p
    return packed


def _bn_fold(stats_sum, stats_sq, gamma, beta, n, w_next, b_next):
    """Fold training-mode BatchNorm1d (biased variance, eps=1e-5) into the
    next Linear layer:  (h*scale + shift) @ W + b == h @ (scale^T * W) +
    (shift @ W + b).  Returns (bf16 folded weight, f32 folded bias)."""
    mean = stats_sum / n
    var = stats_sq / n - mean * mean        # biased variance (training mode)
    scale = gamma * lax.rsqrt(var + _EPS)
    shift = beta - mean * scale
    w_folded = (scale.reshape(-1, 1) * w_next).astype(jnp.bfloat16)
    b_folded = shift @ w_next + b_next
    return w_folded, b_folded


# ---------------------------------------------------------------------------
# Forward pass
# ---------------------------------------------------------------------------

def generative_mlp(x, packed, *, tile_rows=512):
    """Forward pass of GenerativeMLP.  x: (N, in_channel) f32 -> (N, 18) f32."""
    n, c_in = x.shape
    w1, b1 = packed["w1"], packed["b1"]
    k_pad, c1 = w1.shape
    c2 = packed["w2"].shape[1]
    c3 = packed["w3"].shape[1]

    # Row tile: >= 512 rows (multiple of 256 for the v6e/v7x MXU) unless the
    # batch itself is smaller; the batch is padded to a whole number of tiles
    # and padded rows are masked out of the BN statistics in-kernel.
    tile = min(tile_rows, _round_up(max(n, 1), 8))
    n_pad = _round_up(n, tile)
    grid = (n_pad // tile,)

    # Single cheap cast+pad: bf16 MXU operand, K 125 -> 128, rows -> n_pad.
    x_p = jnp.pad(x.astype(jnp.bfloat16), ((0, n_pad - n), (0, k_pad - c_in)))

    x_spec = pl.BlockSpec((tile, k_pad), lambda i: (i, 0))

    def fixed(arr):
        # Constant index map: block is DMA'd once and stays VMEM-resident.
        return pl.BlockSpec(arr.shape, lambda i: (0, 0))

    def stats_out(c):
        return (
            (pl.BlockSpec((1, c), lambda i: (0, 0)),
             pl.BlockSpec((1, c), lambda i: (0, 0))),
            (jax.ShapeDtypeStruct((1, c), jnp.float32),
             jax.ShapeDtypeStruct((1, c), jnp.float32)),
        )

    def cparams(semantics):
        return pltpu.CompilerParams(dimension_semantics=(semantics,),
                                    vmem_limit_bytes=_VMEM_LIMIT_BYTES)

    bytes_x = x_p.size * 2

    # --- Stage A: batch statistics of h1 = ReLU(x @ W1 + b1) ----------------
    specs1, shapes1 = stats_out(c1)
    s1, q1 = pl.pallas_call(
        functools.partial(_stage_a_kernel, n),
        grid=grid,
        in_specs=[x_spec, fixed(w1), fixed(b1)],
        out_specs=specs1,
        out_shape=shapes1,
        compiler_params=cparams("arbitrary"),
        cost_estimate=pl.CostEstimate(
            flops=2 * n_pad * k_pad * c1,
            transcendentals=0,
            bytes_accessed=bytes_x + w1.size * 2 + (b1.size + 2 * c1) * 4),
    )(x_p, w1, b1)

    # Fold BN1 into layer 2 (one small (C1 x C2) rescale per batch).
    w2f, b2f = _bn_fold(s1, q1, packed["g1"], packed["be1"], n,
                        packed["w2"], packed["b2"])

    # --- Stage B: batch statistics of h2 = ReLU(h1 @ W2' + b2') -------------
    specs2, shapes2 = stats_out(c2)
    s2, q2 = pl.pallas_call(
        functools.partial(_stage_b_kernel, n),
        grid=grid,
        in_specs=[x_spec, fixed(w1), fixed(b1), fixed(w2f), fixed(b2f)],
        out_specs=specs2,
        out_shape=shapes2,
        compiler_params=cparams("arbitrary"),
        cost_estimate=pl.CostEstimate(
            flops=2 * n_pad * (k_pad * c1 + c1 * c2),
            transcendentals=0,
            bytes_accessed=bytes_x + (w1.size + w2f.size) * 2
                           + (b1.size + b2f.size + 2 * c2) * 4),
    )(x_p, w1, b1, w2f, b2f)

    # Fold BN2 into layer 3.
    w3f, b3f = _bn_fold(s2, q2, packed["g2"], packed["be2"], n,
                        packed["w3"], packed["b3"])

    # --- Stage C: full forward to the narrow (N, 18) output -----------------
    out = pl.pallas_call(
        _stage_c_kernel,
        grid=grid,
        in_specs=[x_spec, fixed(w1), fixed(b1), fixed(w2f), fixed(b2f),
                  fixed(w3f), fixed(b3f)],
        out_specs=pl.BlockSpec((tile, c3), lambda i: (i, 0)),
        out_shape=jax.ShapeDtypeStruct((n_pad, c3), jnp.float32),
        compiler_params=cparams("parallel"),
        cost_estimate=pl.CostEstimate(
            flops=2 * n_pad * (k_pad * c1 + c1 * c2 + c2 * c3),
            transcendentals=0,
            bytes_accessed=bytes_x + (w1.size + w2f.size + w3f.size) * 2
                           + (b1.size + b2f.size + b3f.size) * 4
                           + n_pad * c3 * 4),
    )(x_p, w1, b1, w2f, b2f, w3f, b3f)

    return out if n_pad == n else out[:n]


# ---------------------------------------------------------------------------
# Synthetic parameters & pure-JAX references
# ---------------------------------------------------------------------------

def init_params(key, in_channel=125, out_points=6):
    """Synthetic parameters matching GenerativeMLP's shapes.  Linear weights
    are stored as (C_in, C_out) (transposed vs torch) so kernels compute
    x @ W directly."""
    c1, c2, c3 = 512, 128, out_points * 3
    ks = jax.random.split(key, 6)

    def lin(kw, kb, cin, cout):
        bound = 1.0 / jnp.sqrt(cin)
        w = jax.random.uniform(kw, (cin, cout), jnp.float32, -bound, bound)
        b = jax.random.uniform(kb, (1, cout), jnp.float32, -bound, bound)
        return w, b

    w1, b1 = lin(ks[0], ks[1], in_channel, c1)
    w2, b2 = lin(ks[2], ks[3], c1, c2)
    w3, b3 = lin(ks[4], ks[5], c2, c3)

    return dict(
        w1=w1, b1=b1, g1=jnp.ones((1, c1), jnp.float32),
        be1=jnp.zeros((1, c1), jnp.float32),
        w2=w2, b2=b2, g2=jnp.ones((1, c2), jnp.float32),
        be2=jnp.zeros((1, c2), jnp.float32),
        w3=w3, b3=b3,
    )


def reference_mlp(x, p, eps=_EPS):
    """Pure-f32 JAX reference of the module's forward (training-mode BN)."""
    def bn(h, g, b):
        m = h.mean(0, keepdims=True)
        v = ((h - m) ** 2).mean(0, keepdims=True)
        return (h - m) / jnp.sqrt(v + eps) * g + b

    h = jnp.maximum(x @ p["w1"] + p["b1"], 0.0)
    h = bn(h, p["g1"], p["be1"])
    h = jnp.maximum(h @ p["w2"] + p["b2"], 0.0)
    h = bn(h, p["g2"], p["be2"])
    h = jnp.maximum(h @ p["w3"] + p["b3"], 0.0)
    return h


def reference_folded(x, packed):
    """Pure-JAX mirror of the kernel algorithm (bf16 MXU operands + BN folded
    into the next layer) -- a tight structural check of the Pallas pipeline
    (tiling, row masking, stats accumulation, folding)."""
    n = x.shape[0]
    k_pad = packed["w1"].shape[0]
    x_b = jnp.pad(x.astype(jnp.bfloat16), ((0, 0), (0, k_pad - x.shape[1])))

    def lin(h, w, b):
        out = jnp.dot(h.astype(jnp.bfloat16), w,
                      preferred_element_type=jnp.float32)
        return jnp.maximum(out + b, 0.0)

    h1 = lin(x_b, packed["w1"], packed["b1"])
    w2f, b2f = _bn_fold(jnp.sum(h1, 0, keepdims=True),
                        jnp.sum(h1 * h1, 0, keepdims=True),
                        packed["g1"], packed["be1"], n,
                        packed["w2"], packed["b2"])
    h2 = lin(h1, w2f, b2f)
    w3f, b3f = _bn_fold(jnp.sum(h2, 0, keepdims=True),
                        jnp.sum(h2 * h2, 0, keepdims=True),
                        packed["g2"], packed["be2"], n,
                        packed["w3"], packed["b3"])
    return lin(h2, w3f, b3f)


if __name__ == "__main__":
    key = jax.random.PRNGKey(0)
    k_x1, k_x2, k_p = jax.random.split(key, 3)

    in_channel, out_points = 125, 6
    params = init_params(k_p, in_channel=in_channel, out_points=out_points)
    packed = pack_params(params)

    # 1) Small single-tile batch (grid = 1).
    x_small = jax.random.normal(k_x1, (8, in_channel), jnp.float32)
    fwd = jax.jit(lambda xx: generative_mlp(xx, packed))
    y_small = jax.block_until_ready(fwd(x_small))
    assert y_small.shape == (8, out_points * 3)

    # 2) Multi-tile batch with a ragged tail (grid = 3, last tile row-masked).
    x_multi = jax.random.normal(k_x2, (300, in_channel), jnp.float32)
    fwd_multi = jax.jit(lambda xx: generative_mlp(xx, packed, tile_rows=128))
    y_multi = jax.block_until_ready(fwd_multi(x_multi))
    assert y_multi.shape == (300, out_points * 3)

    for name, xv, yv in (("small", x_small, y_small),
                         ("multi_tile", x_multi, y_multi)):
        # Tight check vs a pure-JAX mirror of the kernel algorithm (same bf16
        # operands & BN fold): isolates the Pallas tiling/masking/accumulation.
        y_fold = reference_folded(xv, packed)
        err_fold = float(jnp.max(jnp.abs(yv - y_fold)))
        assert jnp.allclose(yv, y_fold, atol=1e-2, rtol=1e-2), (name, err_fold)
        # Loose check vs the f32 PyTorch-semantics reference (bf16 MXU
        # operands -> small expected drift; tolerance loosened per review).
        y_f32 = reference_mlp(xv, params)
        err_f32 = float(jnp.max(jnp.abs(yv - y_f32)))
        assert jnp.allclose(yv, y_f32, atol=1e-1, rtol=1e-1), (name, err_f32)

    print("KERNEL_OK")
</pallas_src>

<mosaic_0001>
module attributes {stable_mosaic.version = 11 : i64} {
  func.func @_stage_a_kernel(%arg0: i32, %arg1: memref<8x128xbf16, #tpu.memory_space<vmem>>, %arg2: memref<128x512xbf16, #tpu.memory_space<vmem>>, %arg3: memref<1x512xf32, #tpu.memory_space<vmem>>, %arg4: memref<1x512xf32, #tpu.memory_space<vmem>>, %arg5: memref<1x512xf32, #tpu.memory_space<vmem>>) attributes {dimension_semantics = [#tpu.dimension_semantics<arbitrary>], iteration_bounds = array<i64: 1>, scalar_prefetch = 0 : i64, scratch_operands = 0 : i64, tpu.core_type = #tpu.core_type<tc>, window_params = [{transform_indices = @transform_0, window_bounds = array<i64: 8, 128>}, {pipeline_mode = #tpu.pipeline_mode<synchronous>, transform_indices = @transform_1, window_bounds = array<i64: 128, 512>}, {pipeline_mode = #tpu.pipeline_mode<synchronous>, transform_indices = @transform_2, window_bounds = array<i64: 1, 512>}, {pipeline_mode = #tpu.pipeline_mode<synchronous>, transform_indices = @transform_3, window_bounds = array<i64: 1, 512>}, {pipeline_mode = #tpu.pipeline_mode<synchronous>, transform_indices = @transform_4, window_bounds = array<i64: 1, 512>}]} {
    %c0 = arith.constant 0 : index
    %c0_0 = arith.constant 0 : index
    %0 = vector.load %arg1[%c0, %c0_0] : memref<8x128xbf16, #tpu.memory_space<vmem>>, vector<8x128xbf16>
    %c0_1 = arith.constant 0 : index
    %c0_2 = arith.constant 0 : index
    %1 = vector.load %arg2[%c0_1, %c0_2] : memref<128x512xbf16, #tpu.memory_space<vmem>>, vector<128x512xbf16>
    %cst = arith.constant dense<0.000000e+00> : vector<8x512xf32>
    %2 = tpu.matmul %0, %1, %cst {dimension_numbers = #tpu.dot_dimension_numbers<[1], [0], [0], [1], [0, 0, 1, 1], [], []>} : vector<8x128xbf16>, vector<128x512xbf16>, vector<8x512xf32> -> vector<8x512xf32>
    %c0_3 = arith.constant 0 : index
    %c0_4 = arith.constant 0 : index
    %3 = vector.load %arg3[%c0_3, %c0_4] : memref<1x512xf32, #tpu.memory_space<vmem>>, vector<1x512xf32>
    %4 = vector.broadcast %3 : vector<1x512xf32> to vector<8x512xf32>
    %5 = arith.addf %2, %4 : vector<8x512xf32>
    %cst_5 = arith.constant 0.000000e+00 : f32
    %6 = vector.broadcast %cst_5 : f32 to vector<8x512xf32>
    %7 = arith.maximumf %5, %6 : vector<8x512xf32>
    %c0_i32 = arith.constant 0 : i32
    %8 = arith.cmpi eq, %arg0, %c0_i32 : i32
    %9 = arith.extui %8 : i1 to i32
    %c0_i32_6 = arith.constant 0 : i32
    %10 = arith.cmpi ne, %9, %c0_i32_6 : i32
    scf.if %10 {
      %cst_19 = arith.constant 0.000000e+00 : f32
      %32 = vector.broadcast %cst_19 : f32 to vector<1x512xf32>
      %c0_20 = arith.constant 0 : index
      %c0_21 = arith.constant 0 : index
      %33 = vector.load %arg4[%c0_20, %c0_21] : memref<1x512xf32, #tpu.memory_space<vmem>>, vector<1x512xf32>
      tpu.vector_store %arg4[%c0_20, %c0_21], %32 {strides = array<i32>} : memref<1x512xf32, #tpu.memory_space<vmem>>, vector<1x512xf32>,
      %cst_22 = arith.constant 0.000000e+00 : f32
      %34 = vector.broadcast %cst_22 : f32 to vector<1x512xf32>
      %c0_23 = arith.constant 0 : index
      %c0_24 = arith.constant 0 : index
      %35 = vector.load %arg5[%c0_23, %c0_24] : memref<1x512xf32, #tpu.memory_space<vmem>>, vector<1x512xf32>
      tpu.vector_store %arg5[%c0_23, %c0_24], %34 {strides = array<i32>} : memref<1x512xf32, #tpu.memory_space<vmem>>, vector<1x512xf32>,
    } else {
    }
    %c8_i32 = arith.constant 8 : i32
    %11 = arith.muli %arg0, %c8_i32 : i32
    %12 = tpu.iota {dimensions = array<i32: 0>} : vector<8x1xi32>
    %13 = vector.broadcast %11 : i32 to vector<8x1xi32>
    %14 = arith.addi %13, %12 : vector<8x1xi32>
    %c8_i32_7 = arith.constant 8 : i32
    %15 = vector.broadcast %c8_i32_7 : i32 to vector<8x1xi32>
    %16 = arith.cmpi slt, %14, %15 : vector<8x1xi32>
    %cst_8 = arith.constant 0.000000e+00 : f32
    %17 = vector.shape_cast %16 : vector<8x1xi1> to vector<8x1xi1>
    %18 = vector.broadcast %17 : vector<8x1xi1> to vector<8x512xi1>
    %19 = vector.broadcast %cst_8 : f32 to vector<8x512xf32>
    %20 = arith.select %18, %7, %19 : vector<8x512xi1>, vector<8x512xf32>
    %c0_9 = arith.constant 0 : index
    %c0_10 = arith.constant 0 : index
    %21 = vector.load %arg4[%c0_9, %c0_10] : memref<1x512xf32, #tpu.memory_space<vmem>>, vector<1x512xf32>
    %cst_11 = arith.constant dense<0.000000e+00> : vector<512xf32>
    %22 = vector.multi_reduction <add>, %20, %cst_11 [0] : vector<8x512xf32> to vector<512xf32>
    %23 = vector.shape_cast %22 : vector<512xf32> to vector<1x512xf32>
    %24 = arith.addf %21, %23 : vector<1x512xf32>
    %c0_12 = arith.constant 0 : index
    %c0_13 = arith.constant 0 : index
    %25 = vector.load %arg4[%c0_12, %c0_13] : memref<1x512xf32, #tpu.memory_space<vmem>>, vector<1x512xf32>
    tpu.vector_store %arg4[%c0_12, %c0_13], %24 {strides = array<i32>} : memref<1x512xf32, #tpu.memory_space<vmem>>, vector<1x512xf32>,
    %c0_14 = arith.constant 0 : index
    %c0_15 = arith.constant 0 : index
    %26 = vector.load %arg5[%c0_14, %c0_15] : memref<1x512xf32, #tpu.memory_space<vmem>>, vector<1x512xf32>
    %27 = arith.mulf %20, %20 : vector<8x512xf32>
    %cst_16 = arith.constant dense<0.000000e+00> : vector<512xf32>
    %28 = vector.multi_reduction <add>, %27, %cst_16 [0] : vector<8x512xf32> to vector<512xf32>
    %29 = vector.shape_cast %28 : vector<512xf32> to vector<1x512xf32>
    %30 = arith.addf %26, %29 : vector<1x512xf32>
    %c0_17 = arith.constant 0 : index
    %c0_18 = arith.constant 0 : index
    %31 = vector.load %arg5[%c0_17, %c0_18] : memref<1x512xf32, #tpu.memory_space<vmem>>, vector<1x512xf32>
    tpu.vector_store %arg5[%c0_17, %c0_18], %30 {strides = array<i32>} : memref<1x512xf32, #tpu.memory_space<vmem>>, vector<1x512xf32>,
    return
  }
  func.func @transform_0(%arg0: i32) -> (i32, i32) {
    %c0_i32 = arith.constant 0 : i32
    %c0_i32_0 = arith.constant 0 : i32
    return %arg0, %c0_i32 : i32, i32
  }
  func.func @transform_1(%arg0: i32) -> (i32, i32) {
    %c0_i32 = arith.constant 0 : i32
    %c0_i32_0 = arith.constant 0 : i32
    %c0_i32_1 = arith.constant 0 : i32
    return %c0_i32, %c0_i32_0 : i32, i32
  }
  func.func @transform_2(%arg0: i32) -> (i32, i32) {
    %c0_i32 = arith.constant 0 : i32
    %c0_i32_0 = arith.constant 0 : i32
    %c0_i32_1 = arith.constant 0 : i32
    return %c0_i32, %c0_i32_0 : i32, i32
  }
  func.func @transform_3(%arg0: i32) -> (i32, i32) {
    %c0_i32 = arith.constant 0 : i32
    %c0_i32_0 = arith.constant 0 : i32
    %c0_i32_1 = arith.constant 0 : i32
    return %c0_i32, %c0_i32_0 : i32, i32
  }
  func.func @transform_4(%arg0: i32) -> (i32, i32) {
    %c0_i32 = arith.constant 0 : i32
    %c0_i32_0 = arith.constant 0 : i32
    %c0_i32_1 = arith.constant 0 : i32
    return %c0_i32, %c0_i32_0 : i32, i32
  }
}

module attributes {stable_mosaic.version = 11 : i64} {
  func.func @_stage_b_kernel(%arg0: i32, %arg1: memref<8x128xbf16, #tpu.memory_space<vmem>>, %arg2: memref<128x512xbf16, #tpu.memory_space<vmem>>, %arg3: memref<1x512xf32, #tpu.memory_space<vmem>>, %arg4: memref<512x128xbf16, #tpu.memory_space<vmem>>, %arg5: memref<1x128xf32, #tpu.memory_space<vmem>>, %arg6: memref<1x128xf32, #tpu.memory_space<vmem>>, %arg7: memref<1x128xf32, #tpu.memory_space<vmem>>) attributes {dimension_semantics = [#tpu.dimension_semantics<arbitrary>], iteration_bounds = array<i64: 1>, scalar_prefetch = 0 : i64, scratch_operands = 0 : i64, tpu.core_type = #tpu.core_type<tc>, window_params = [{transform_indices = @transform_0, window_bounds = array<i64: 8, 128>}, {pipeline_mode = #tpu.pipeline_mode<synchronous>, transform_indices = @transform_1, window_bounds = array<i64: 128, 512>}, {pipeline_mode = #tpu.pipeline_mode<synchronous>, transform_indices = @transform_2, window_bounds = array<i64: 1, 512>}, {pipeline_mode = #tpu.pipeline_mode<synchronous>, transform_indices = @transform_3, window_bounds = array<i64: 512, 128>}, {pipeline_mode = #tpu.pipeline_mode<synchronous>, transform_indices = @transform_4, window_bounds = array<i64: 1, 128>}, {pipeline_mode = #tpu.pipeline_mode<synchronous>, transform_indices = @transform_5, window_bounds = array<i64: 1, 128>}, {pipeline_mode = #tpu.pipeline_mode<synchronous>, transform_indices = @transform_6, window_bounds = array<i64: 1, 128>}]} {
    %c0 = arith.constant 0 : index
    %c0_0 = arith.constant 0 : index
    %0 = vector.load %arg1[%c0, %c0_0] : memref<8x128xbf16, #tpu.memory_space<vmem>>, vector<8x128xbf16>
    %c0_1 = arith.constant 0 : index
    %c0_2 = arith.constant 0 : index
    %1 = vector.load %arg2[%c0_1, %c0_2] : memref<128x512xbf16, #tpu.memory_space<vmem>>, vector<128x512xbf16>
    %cst = arith.constant dense<0.000000e+00> : vector<8x512xf32>
    %2 = tpu.matmul %0, %1, %cst {dimension_numbers = #tpu.dot_dimension_numbers<[1], [0], [0], [1], [0, 0, 1, 1], [], []>} : vector<8x128xbf16>, vector<128x512xbf16>, vector<8x512xf32> -> vector<8x512xf32>
    %c0_3 = arith.constant 0 : index
    %c0_4 = arith.constant 0 : index
    %3 = vector.load %arg3[%c0_3, %c0_4] : memref<1x512xf32, #tpu.memory_space<vmem>>, vector<1x512xf32>
    %4 = vector.broadcast %3 : vector<1x512xf32> to vector<8x512xf32>
    %5 = arith.addf %2, %4 : vector<8x512xf32>
    %cst_5 = arith.constant 0.000000e+00 : f32
    %6 = vector.broadcast %cst_5 : f32 to vector<8x512xf32>
    %7 = arith.maximumf %5, %6 : vector<8x512xf32>
    %8 = arith.truncf %7 : vector<8x512xf32> to vector<8x512xbf16>
    %c0_6 = arith.constant 0 : index
    %c0_7 = arith.constant 0 : index
    %9 = vector.load %arg4[%c0_6, %c0_7] : memref<512x128xbf16, #tpu.memory_space<vmem>>, vector<512x128xbf16>
    %cst_8 = arith.constant dense<0.000000e+00> : vector<8x128xf32>
    %10 = tpu.matmul %8, %9, %cst_8 {dimension_numbers = #tpu.dot_dimension_numbers<[1], [0], [0], [1], [0, 0, 1, 1], [], []>} : vector<8x512xbf16>, vector<512x128xbf16>, vector<8x128xf32> -> vector<8x128xf32>
    %c0_9 = arith.constant 0 : index
    %c0_10 = arith.constant 0 : index
    %11 = vector.load %arg5[%c0_9, %c0_10] : memref<1x128xf32, #tpu.memory_space<vmem>>, vector<1x128xf32>
    %12 = vector.broadcast %11 : vector<1x128xf32> to vector<8x128xf32>
    %13 = arith.addf %10, %12 : vector<8x128xf32>
    %cst_11 = arith.constant 0.000000e+00 : f32
    %14 = vector.broadcast %cst_11 : f32 to vector<8x128xf32>
    %15 = arith.maximumf %13, %14 : vector<8x128xf32>
    %c0_i32 = arith.constant 0 : i32
    %16 = arith.cmpi eq, %arg0, %c0_i32 : i32
    %17 = arith.extui %16 : i1 to i32
    %c0_i32_12 = arith.constant 0 : i32
    %18 = arith.cmpi ne, %17, %c0_i32_12 : i32
    scf.if %18 {
      %cst_25 = arith.constant 0.000000e+00 : f32
      %40 = vector.broadcast %cst_25 : f32 to vector<1x128xf32>
      %c0_26 = arith.constant 0 : index
      %c0_27 = arith.constant 0 : index
      %41 = vector.load %arg6[%c0_26, %c0_27] : memref<1x128xf32, #tpu.memory_space<vmem>>, vector<1x128xf32>
      tpu.vector_store %arg6[%c0_26, %c0_27], %40 {strides = array<i32>} : memref<1x128xf32, #tpu.memory_space<vmem>>, vector<1x128xf32>,
      %cst_28 = arith.constant 0.000000e+00 : f32
      %42 = vector.broadcast %cst_28 : f32 to vector<1x128xf32>
      %c0_29 = arith.constant 0 : index
      %c0_30 = arith.constant 0 : index
      %43 = vector.load %arg7[%c0_29, %c0_30] : memref<1x128xf32, #tpu.memory_space<vmem>>, vector<1x128xf32>
      tpu.vector_store %arg7[%c0_29, %c0_30], %42 {strides = array<i32>} : memref<1x128xf32, #tpu.memory_space<vmem>>, vector<1x128xf32>,
    } else {
    }
    %c8_i32 = arith.constant 8 : i32
    %19 = arith.muli %arg0, %c8_i32 : i32
    %20 = tpu.iota {dimensions = array<i32: 0>} : vector<8x1xi32>
    %21 = vector.broadcast %19 : i32 to vector<8x1xi32>
    %22 = arith.addi %21, %20 : vector<8x1xi32>
    %c8_i32_13 = arith.constant 8 : i32
    %23 = vector.broadcast %c8_i32_13 : i32 to vector<8x1xi32>
    %24 = arith.cmpi slt, %22, %23 : vector<8x1xi32>
    %cst_14 = arith.constant 0.000000e+00 : f32
    %25 = vector.shape_cast %24 : vector<8x1xi1> to vector<8x1xi1>
    %26 = vector.broadcast %25 : vector<8x1xi1> to vector<8x128xi1>
    %27 = vector.broadcast %cst_14 : f32 to vector<8x128xf32>
    %28 = arith.select %26, %15, %27 : vector<8x128xi1>, vector<8x128xf32>
    %c0_15 = arith.constant 0 : index
    %c0_16 = arith.constant 0 : index
    %29 = vector.load %arg6[%c0_15, %c0_16] : memref<1x128xf32, #tpu.memory_space<vmem>>, vector<1x128xf32>
    %cst_17 = arith.constant dense<0.000000e+00> : vector<128xf32>
    %30 = vector.multi_reduction <add>, %28, %cst_17 [0] : vector<8x128xf32> to vector<128xf32>
    %31 = vector.shape_cast %30 : vector<128xf32> to vector<1x128xf32>
    %32 = arith.addf %29, %31 : vector<1x128xf32>
    %c0_18 = arith.constant 0 : index
    %c0_19 = arith.constant 0 : index
    %33 = vector.load %arg6[%c0_18, %c0_19] : memref<1x128xf32, #tpu.memory_space<vmem>>, vector<1x128xf32>
    tpu.vector_store %arg6[%c0_18, %c0_19], %32 {strides = array<i32>} : memref<1x128xf32, #tpu.memory_space<vmem>>, vector<1x128xf32>,
    %c0_20 = arith.constant 0 : index
    %c0_21 = arith.constant 0 : index
    %34 = vector.load %arg7[%c0_20, %c0_21] : memref<1x128xf32, #tpu.memory_space<vmem>>, vector<1x128xf32>
    %35 = arith.mulf %28, %28 : vector<8x128xf32>
    %cst_22 = arith.constant dense<0.000000e+00> : vector<128xf32>
    %36 = vector.multi_reduction <add>, %35, %cst_22 [0] : vector<8x128xf32> to vector<128xf32>
    %37 = vector.shape_cast %36 : vector<128xf32> to vector<1x128xf32>
    %38 = arith.addf %34, %37 : vector<1x128xf32>
    %c0_23 = arith.constant 0 : index
    %c0_24 = arith.constant 0 : index
    %39 = vector.load %arg7[%c0_23, %c0_24] : memref<1x128xf32, #tpu.memory_space<vmem>>, vector<1x128xf32>
    tpu.vector_store %arg7[%c0_23, %c0_24], %38 {strides = array<i32>} : memref<1x128xf32, #tpu.memory_space<vmem>>, vector<1x128xf32>,
    return
  }
  func.func @transform_0(%arg0: i32) -> (i32, i32) {
    %c0_i32 = arith.constant 0 : i32
    %c0_i32_0 = arith.constant 0 : i32
    return %arg0, %c0_i32 : i32, i32
  }
  func.func @transform_1(%arg0: i32) -> (i32, i32) {
    %c0_i32 = arith.constant 0 : i32
    %c0_i32_0 = arith.constant 0 : i32
    %c0_i32_1 = arith.constant 0 : i32
    return %c0_i32, %c0_i32_0 : i32, i32
  }
  func.func @transform_2(%arg0: i32) -> (i32, i32) {
    %c0_i32 = arith.constant 0 : i32
    %c0_i32_0 = arith.constant 0 : i32
    %c0_i32_1 = arith.constant 0 : i32
    return %c0_i32, %c0_i32_0 : i32, i32
  }
  func.func @transform_3(%arg0: i32) -> (i32, i32) {
    %c0_i32 = arith.constant 0 : i32
    %c0_i32_0 = arith.constant 0 : i32
    %c0_i32_1 = arith.constant 0 : i32
    return %c0_i32, %c0_i32_0 : i32, i32
  }
  func.func @transform_4(%arg0: i32) -> (i32, i32) {
    %c0_i32 = arith.constant 0 : i32
    %c0_i32_0 = arith.constant 0 : i32
    %c0_i32_1 = arith.constant 0 : i32
    return %c0_i32, %c0_i32_0 : i32, i32
  }
  func.func @transform_5(%arg0: i32) -> (i32, i32) {
    %c0_i32 = arith.constant 0 : i32
    %c0_i32_0 = arith.constant 0 : i32
    %c0_i32_1 = arith.constant 0 : i32
    return %c0_i32, %c0_i32_0 : i32, i32
  }
  func.func @transform_6(%arg0: i32) -> (i32, i32) {
    %c0_i32 = arith.constant 0 : i32
    %c0_i32_0 = arith.constant 0 : i32
    %c0_i32_1 = arith.constant 0 : i32
    return %c0_i32, %c0_i32_0 : i32, i32
  }
}

module attributes {stable_mosaic.version = 11 : i64} {
  func.func @_stage_c_kernel(%arg0: i32, %arg1: memref<8x128xbf16, #tpu.memory_space<vmem>>, %arg2: memref<128x512xbf16, #tpu.memory_space<vmem>>, %arg3: memref<1x512xf32, #tpu.memory_space<vmem>>, %arg4: memref<512x128xbf16, #tpu.memory_space<vmem>>, %arg5: memref<1x128xf32, #tpu.memory_space<vmem>>, %arg6: memref<128x18xbf16, #tpu.memory_space<vmem>>, %arg7: memref<1x18xf32, #tpu.memory_space<vmem>>, %arg8: memref<8x18xf32, #tpu.memory_space<vmem>>) attributes {dimension_semantics = [#tpu.dimension_semantics<parallel>], iteration_bounds = array<i64: 1>, scalar_prefetch = 0 : i64, scratch_operands = 0 : i64, tpu.core_type = #tpu.core_type<tc>, window_params = [{transform_indices = @transform_0, window_bounds = array<i64: 8, 128>}, {pipeline_mode = #tpu.pipeline_mode<synchronous>, transform_indices = @transform_1, window_bounds = array<i64: 128, 512>}, {pipeline_mode = #tpu.pipeline_mode<synchronous>, transform_indices = @transform_2, window_bounds = array<i64: 1, 512>}, {pipeline_mode = #tpu.pipeline_mode<synchronous>, transform_indices = @transform_3, window_bounds = array<i64: 512, 128>}, {pipeline_mode = #tpu.pipeline_mode<synchronous>, transform_indices = @transform_4, window_bounds = array<i64: 1, 128>}, {pipeline_mode = #tpu.pipeline_mode<synchronous>, transform_indices = @transform_5, window_bounds = array<i64: 128, 18>}, {pipeline_mode = #tpu.pipeline_mode<synchronous>, transform_indices = @transform_6, window_bounds = array<i64: 1, 18>}, {transform_indices = @transform_7, window_bounds = array<i64: 8, 18>}]} {
    %c0 = arith.constant 0 : index
    %c0_0 = arith.constant 0 : index
    %0 = vector.load %arg1[%c0, %c0_0] : memref<8x128xbf16, #tpu.memory_space<vmem>>, vector<8x128xbf16>
    %c0_1 = arith.constant 0 : index
    %c0_2 = arith.constant 0 : index
    %1 = vector.load %arg2[%c0_1, %c0_2] : memref<128x512xbf16, #tpu.memory_space<vmem>>, vector<128x512xbf16>
    %cst = arith.constant dense<0.000000e+00> : vector<8x512xf32>
    %2 = tpu.matmul %0, %1, %cst {dimension_numbers = #tpu.dot_dimension_numbers<[1], [0], [0], [1], [0, 0, 1, 1], [], []>} : vector<8x128xbf16>, vector<128x512xbf16>, vector<8x512xf32> -> vector<8x512xf32>
    %c0_3 = arith.constant 0 : index
    %c0_4 = arith.constant 0 : index
    %3 = vector.load %arg3[%c0_3, %c0_4] : memref<1x512xf32, #tpu.memory_space<vmem>>, vector<1x512xf32>
    %4 = vector.broadcast %3 : vector<1x512xf32> to vector<8x512xf32>
    %5 = arith.addf %2, %4 : vector<8x512xf32>
    %cst_5 = arith.constant 0.000000e+00 : f32
    %6 = vector.broadcast %cst_5 : f32 to vector<8x512xf32>
    %7 = arith.maximumf %5, %6 : vector<8x512xf32>
    %8 = arith.truncf %7 : vector<8x512xf32> to vector<8x512xbf16>
    %c0_6 = arith.constant 0 : index
    %c0_7 = arith.constant 0 : index
    %9 = vector.load %arg4[%c0_6, %c0_7] : memref<512x128xbf16, #tpu.memory_space<vmem>>, vector<512x128xbf16>
    %cst_8 = arith.constant dense<0.000000e+00> : vector<8x128xf32>
    %10 = tpu.matmul %8, %9, %cst_8 {dimension_numbers = #tpu.dot_dimension_numbers<[1], [0], [0], [1], [0, 0, 1, 1], [], []>} : vector<8x512xbf16>, vector<512x128xbf16>, vector<8x128xf32> -> vector<8x128xf32>
    %c0_9 = arith.constant 0 : index
    %c0_10 = arith.constant 0 : index
    %11 = vector.load %arg5[%c0_9, %c0_10] : memref<1x128xf32, #tpu.memory_space<vmem>>, vector<1x128xf32>
    %12 = vector.broadcast %11 : vector<1x128xf32> to vector<8x128xf32>
    %13 = arith.addf %10, %12 : vector<8x128xf32>
    %cst_11 = arith.constant 0.000000e+00 : f32
    %14 = vector.broadcast %cst_11 : f32 to vector<8x128xf32>
    %15 = arith.maximumf %13, %14 : vector<8x128xf32>
    %16 = arith.truncf %15 : vector<8x128xf32> to vector<8x128xbf16>
    %c0_12 = arith.constant 0 : index
    %c0_13 = arith.constant 0 : index
    %17 = vector.load %arg6[%c0_12, %c0_13] : memref<128x18xbf16, #tpu.memory_space<vmem>>, vector<128x18xbf16>
    %cst_14 = arith.constant dense<0.000000e+00> : vector<8x18xf32>
    %18 = tpu.matmul %16, %17, %cst_14 {dimension_numbers = #tpu.dot_dimension_numbers<[1], [0], [0], [1], [0, 0, 1, 1], [], []>} : vector<8x128xbf16>, vector<128x18xbf16>, vector<8x18xf32> -> vector<8x18xf32>
    %c0_15 = arith.constant 0 : index
    %c0_16 = arith.constant 0 : index
    %19 = vector.load %arg7[%c0_15, %c0_16] : memref<1x18xf32, #tpu.memory_space<vmem>>, vector<1x18xf32>
    %20 = vector.broadcast %19 : vector<1x18xf32> to vector<8x18xf32>
    %21 = arith.addf %18, %20 : vector<8x18xf32>
    %cst_17 = arith.constant 0.000000e+00 : f32
    %22 = vector.broadcast %cst_17 : f32 to vector<8x18xf32>
    %23 = arith.maximumf %21, %22 : vector<8x18xf32>
    %c0_18 = arith.constant 0 : index
    %c0_19 = arith.constant 0 : index
    %24 = vector.load %arg8[%c0_18, %c0_19] : memref<8x18xf32, #tpu.memory_space<vmem>>, vector<8x18xf32>
    tpu.vector_store %arg8[%c0_18, %c0_19], %23 {strides = array<i32>} : memref<8x18xf32, #tpu.memory_space<vmem>>, vector<8x18xf32>,
    return
  }
  func.func @transform_0(%arg0: i32) -> (i32, i32) {
    %c0_i32 = arith.constant 0 : i32
    %c0_i32_0 = arith.constant 0 : i32
    return %arg0, %c0_i32 : i32, i32
  }
  func.func @transform_1(%arg0: i32) -> (i32, i32) {
    %c0_i32 = arith.constant 0 : i32
    %c0_i32_0 = arith.constant 0 : i32
    %c0_i32_1 = arith.constant 0 : i32
    return %c0_i32, %c0_i32_0 : i32, i32
  }
  func.func @transform_2(%arg0: i32) -> (i32, i32) {
    %c0_i32 = arith.constant 0 : i32
    %c0_i32_0 = arith.constant 0 : i32
    %c0_i32_1 = arith.constant 0 : i32
    return %c0_i32, %c0_i32_0 : i32, i32
  }
  func.func @transform_3(%arg0: i32) -> (i32, i32) {
    %c0_i32 = arith.constant 0 : i32
    %c0_i32_0 = arith.constant 0 : i32
    %c0_i32_1 = arith.constant 0 : i32
    return %c0_i32, %c0_i32_0 : i32, i32
  }
  func.func @transform_4(%arg0: i32) -> (i32, i32) {
    %c0_i32 = arith.constant 0 : i32
    %c0_i32_0 = arith.constant 0 : i32
    %c0_i32_1 = arith.constant 0 : i32
    return %c0_i32, %c0_i32_0 : i32, i32
  }
  func.func @transform_5(%arg0: i32) -> (i32, i32) {
    %c0_i32 = arith.constant 0 : i32
    %c0_i32_0 = arith.constant 0 : i32
    %c0_i32_1 = arith.constant 0 : i32
    return %c0_i32, %c0_i32_0 : i32, i32
  }
  func.func @transform_6(%arg0: i32) -> (i32, i32) {
    %c0_i32 = arith.constant 0 : i32
    %c0_i32_0 = arith.constant 0 : i32
    %c0_i32_1 = arith.constant 0 : i32
    return %c0_i32, %c0_i32_0 : i32, i32
  }
  func.func @transform_7(%arg0: i32) -> (i32, i32) {
    %c0_i32 = arith.constant 0 : i32
    %c0_i32_0 = arith.constant 0 : i32
    return %arg0, %c0_i32 : i32, i32
  }
}

</mosaic_0001>

<llo_original>
// kernel: _lambda_.3
$region0: #{_lambda_.3}
  #allocation0 [shape = 'u32[]', space=smem, size = 0x4, offset = 0x4, fixed_abs, tag = 'smem constant byte address 0x4 - core index']
  #allocation1 [shape = 'u32[144,128]{1,0:T(1,128)}', space=vmem, size = 0x12000, scoped, tag = 'internal scratch']
  %s0 = inlined_call_operand.vmem [shape: bf16[8,128], index: 0, kind: input, shape index: {}]
  %s1 = inlined_call_operand.vmem [shape: bf16[128,512], index: 1, kind: input, shape index: {}]
  %s2 = inlined_call_operand.vmem [shape: f32[1,512], index: 2, kind: input, shape index: {}]
  %s3 = inlined_call_operand.vmem [shape: f32[1,512], index: 3, kind: output, shape index: {0}]
  %s4 = inlined_call_operand.vmem [shape: f32[1,512], index: 4, kind: output, shape index: {1}]
  %5 = xla_tuple %s3, %s4
  %s6 = sld [smem:[#allocation0]]
  $region34: #{_lambda_.3} parent=0
    _
  %s8 = ssub.s32 1, %s6
  %s9 = scalar_select 0, %s8, %s6
  // Predicated region
  $region2: #{_lambda_.3} parent=0 // pred_check
    _
  $region3: #{_lambda_.3} parent=0 // pred_check_branch
    %11 = sbr.rel (0) target = $region5
  $region4: #{_lambda_.3} parent=0 // pred_region
    _
  $region5: #{_lambda_.3} parent=0 // pred_fallthru
    _
  // Predicated region
  $region6: #{_lambda_.3} parent=0 // pred_check
    _
  $region7: #{_lambda_.3} parent=0 // pred_check_branch
    %13 = sbr.rel (0) target = $region9
  $region8: #{_lambda_.3} parent=0 // pred_region
    _
  $region9: #{_lambda_.3} parent=0 // pred_fallthru
    _
  // Predicated region
  $region10: #{_lambda_.3} parent=0 // pred_check
    _
  $region11: #{_lambda_.3} parent=0 // pred_check_branch
    %15 = sbr.rel (0) target = $region13
  $region12: #{_lambda_.3} parent=0 // pred_region
    _
  $region13: #{_lambda_.3} parent=0 // pred_fallthru
    _
  %v17 = vld [vmem:[%s0] sm:$0xf]
  %v18 = vld [vmem:[%s1] sm:$0xff]
  %v19 = vld [vmem:[%s1 + $0x8] sm:$0xff]
  %v20 = vld [vmem:[%s1 + $0x10] sm:$0xff]
  %v21 = vld [vmem:[%s1 + $0x18] sm:$0xff]
  %v22 = vld [vmem:[%s1 + $0x20] sm:$0xff]
  %v23 = vld [vmem:[%s1 + $0x28] sm:$0xff]
  %v24 = vld [vmem:[%s1 + $0x30] sm:$0xff]
  %v25 = vld [vmem:[%s1 + $0x38] sm:$0xff]
  %v26 = vld [vmem:[%s1 + $0x40] sm:$0xff]
  %v27 = vld [vmem:[%s1 + $0x48] sm:$0xff]
  %v28 = vld [vmem:[%s1 + $0x50] sm:$0xff]
  %v29 = vld [vmem:[%s1 + $0x58] sm:$0xff]
  %v30 = vld [vmem:[%s1 + $0x60] sm:$0xff]
  %v31 = vld [vmem:[%s1 + $0x68] sm:$0xff]
  %v32 = vld [vmem:[%s1 + $0x70] sm:$0xff]
  %v33 = vld [vmem:[%s1 + $0x78] sm:$0xff]
  %v34 = vld [vmem:[%s1 + $0x80] sm:$0xff]
  %v35 = vld [vmem:[%s1 + $0x88] sm:$0xff]
  %v36 = vld [vmem:[%s1 + $0x90] sm:$0xff]
  %v37 = vld [vmem:[%s1 + $0x98] sm:$0xff]
  %v38 = vld [vmem:[%s1 + $0xa0] sm:$0xff]
  %v39 = vld [vmem:[%s1 + $0xa8] sm:$0xff]
  %v40 = vld [vmem:[%s1 + $0xb0] sm:$0xff]
  %v41 = vld [vmem:[%s1 + $0xb8] sm:$0xff]
  %v42 = vld [vmem:[%s1 + $0xc0] sm:$0xff]
  %v43 = vld [vmem:[%s1 + $0xc8] sm:$0xff]
  %v44 = vld [vmem:[%s1 + $0xd0] sm:$0xff]
  %v45 = vld [vmem:[%s1 + $0xd8] sm:$0xff]
  %v46 = vld [vmem:[%s1 + $0xe0] sm:$0xff]
  %v47 = vld [vmem:[%s1 + $0xe8] sm:$0xff]
  %v48 = vld [vmem:[%s1 + $0xf0] sm:$0xff]
  %v49 = vld [vmem:[%s1 + $0xf8] sm:$0xff]
  %v50 = vld [vmem:[%s2] sm:$0xf]
  %v52 = vlaneseq
  %v53 = vshrl.u32 %v52, 7
  %v54 = vsub.s32 0, %v53
  %v55 = vrot.slane %v50, %v54
  %v56 = vlaneseq
  %v57 = vshrl.u32 %v56, 7
  %v58 = vsub.s32 1, %v57
  %v59 = vrot.slane %v50, %v58
  %v60 = vlaneseq
  %v61 = vshrl.u32 %v60, 7
  %v62 = vsub.s32 2, %v61
  %v63 = vrot.slane %v50, %v62
  %v64 = vlaneseq
  %v65 = vshrl.u32 %v64, 7
  %v66 = vsub.s32 3, %v65
  %v67 = vrot.slane %v50, %v66
  %v104 = vunpack.c.l.b16 %v18
  %v105 = vunpack.c.h.b16 %v18
  %v106 = vunpack.c.l.b16 %v19
  %v107 = vunpack.c.h.b16 %v19
  %v108 = vunpack.c.l.b16 %v20
  %v109 = vunpack.c.h.b16 %v20
  %v110 = vunpack.c.l.b16 %v21
  %v111 = vunpack.c.h.b16 %v21
  %v112 = vunpack.c.l.b16 %v22
  %v113 = vunpack.c.h.b16 %v22
  %v114 = vunpack.c.l.b16 %v23
  %v115 = vunpack.c.h.b16 %v23
  %v116 = vunpack.c.l.b16 %v24
  %v117 = vunpack.c.h.b16 %v24
  %v118 = vunpack.c.l.b16 %v25
  %v119 = vunpack.c.h.b16 %v25
  %v120 = vunpack.c.l.b16 %v26
  %v121 = vunpack.c.h.b16 %v26
  %v122 = vunpack.c.l.b16 %v27
  %v123 = vunpack.c.h.b16 %v27
  %v124 = vunpack.c.l.b16 %v28
  %v125 = vunpack.c.h.b16 %v28
  %v126 = vunpack.c.l.b16 %v29
  %v127 = vunpack.c.h.b16 %v29
  %v128 = vunpack.c.l.b16 %v30
  %v129 = vunpack.c.h.b16 %v30
  %v130 = vunpack.c.l.b16 %v31
  %v131 = vunpack.c.h.b16 %v31
  %v132 = vunpack.c.l.b16 %v32
  %v133 = vunpack.c.h.b16 %v32
  %v134 = vunpack.c.l.b16 %v33
  %v135 = vunpack.c.h.b16 %v33
  %v136 = vunpack.c.l.b16 %v34
  %v137 = vunpack.c.h.b16 %v34
  %v138 = vunpack.c.l.b16 %v35
  %v139 = vunpack.c.h.b16 %v35
  %v140 = vunpack.c.l.b16 %v36
  %v141 = vunpack.c.h.b16 %v36
  %v142 = vunpack.c.l.b16 %v37
  %v143 = vunpack.c.h.b16 %v37
  %v144 = vunpack.c.l.b16 %v38
  %v145 = vunpack.c.h.b16 %v38
  %v146 = vunpack.c.l.b16 %v39
  %v147 = vunpack.c.h.b16 %v39
  %v148 = vunpack.c.l.b16 %v40
  %v149 = vunpack.c.h.b16 %v40
  %v150 = vunpack.c.l.b16 %v41
  %v151 = vunpack.c.h.b16 %v41
  %v152 = vunpack.c.l.b16 %v42
  %v153 = vunpack.c.h.b16 %v42
  %v154 = vunpack.c.l.b16 %v43
  %v155 = vunpack.c.h.b16 %v43
  %v156 = vunpack.c.l.b16 %v44
  %v157 = vunpack.c.h.b16 %v44
  %v158 = vunpack.c.l.b16 %v45
  %v159 = vunpack.c.h.b16 %v45
  %v160 = vunpack.c.l.b16 %v46
  %v161 = vunpack.c.h.b16 %v46
  %v162 = vunpack.c.l.b16 %v47
  %v163 = vunpack.c.h.b16 %v47
  %v164 = vunpack.c.l.b16 %v48
  %v165 = vunpack.c.h.b16 %v48
  %v166 = vunpack.c.l.b16 %v49
  %v167 = vunpack.c.h.b16 %v49
  %v168 = vpack.c.b16 %v108, %v104
  %v169 = vpack.c.b16 %v109, %v105
  %v170 = vpack.c.b16 %v110, %v106
  %v171 = vpack.c.b16 %v111, %v107
  %v172 = vpack.c.b16 %v116, %v112
  %v173 = vpack.c.b16 %v117, %v113
  %v174 = vpack.c.b16 %v118, %v114
  %v175 = vpack.c.b16 %v119, %v115
  %v176 = vpack.c.b16 %v124, %v120
  %v177 = vpack.c.b16 %v125, %v121
  %v178 = vpack.c.b16 %v126, %v122
  %v179 = vpack.c.b16 %v127, %v123
  %v180 = vpack.c.b16 %v132, %v128
  %v181 = vpack.c.b16 %v133, %v129
  %v182 = vpack.c.b16 %v134, %v130
  %v183 = vpack.c.b16 %v135, %v131
  %v184 = vpack.c.b16 %v140, %v136
  %v185 = vpack.c.b16 %v141, %v137
  %v186 = vpack.c.b16 %v142, %v138
  %v187 = vpack.c.b16 %v143, %v139
  %v188 = vpack.c.b16 %v148, %v144
  %v189 = vpack.c.b16 %v149, %v145
  %v190 = vpack.c.b16 %v150, %v146
  %v191 = vpack.c.b16 %v151, %v147
  %v192 = vpack.c.b16 %v156, %v152
  %v193 = vpack.c.b16 %v157, %v153
  %v194 = vpack.c.b16 %v158, %v154
  %v195 = vpack.c.b16 %v159, %v155
  %v196 = vpack.c.b16 %v164, %v160
  %v197 = vpack.c.b16 %v165, %v161
  %v198 = vpack.c.b16 %v166, %v162
  %v199 = vpack.c.b16 %v167, %v163
  %232 = vmatprep.subr.bf16.mxu0 %v169
  %233 = vmatpush1.bf16.msra.mxu0 %v168
  %234 = vmatprep.subr.bf16.mxu0 %v173
  %235 = vmatpush1.bf16.msra.mxu0 %v172
  %236 = vmatprep.subr.bf16.mxu0 %v177
  %237 = vmatpush1.bf16.msra.mxu0 %v176
  %238 = vmatprep.subr.bf16.mxu0 %v181
  %239 = vmatpush1.bf16.msra.mxu0 %v180
  %240 = vmatprep.subr.bf16.mxu0 %v185
  %241 = vmatpush1.bf16.msra.mxu0 %v184
  %242 = vmatprep.subr.bf16.mxu0 %v189
  %243 = vmatpush1.bf16.msra.mxu0 %v188
  %244 = vmatprep.subr.bf16.mxu0 %v193
  %245 = vmatpush1.bf16.msra.mxu0 %v192
  %246 = vmatprep.subr.bf16.mxu0 %v197
  %247 = vmatpush1.bf16.msra.mxu0 %v196
  %248 = vmatprep.subr.bf16.mxu0 0
  %249 = vmatpush1.bf16.msra.mxu0 0
  %250 = vmatprep.subr.bf16.mxu0 0
  %251 = vmatpush1.bf16.msra.mxu0 0
  %252 = vmatprep.subr.bf16.mxu0 0
  %253 = vmatpush1.bf16.msra.mxu0 0
  %254 = vmatprep.subr.bf16.mxu0 0
  %255 = vmatpush1.bf16.msra.mxu0 0
  %256 = vmatprep.subr.bf16.mxu0 0
  %257 = vmatpush1.bf16.msra.mxu0 0
  %258 = vmatprep.subr.bf16.mxu0 0
  %259 = vmatpush1.bf16.msra.mxu0 0
  %260 = vmatprep.subr.bf16.mxu0 0
  %261 = vmatpush1.bf16.msra.mxu0 0
  %262 = vmatprep.subr.bf16.mxu0 0
  %263 = vmatpush1.bf16.msra.mxu0 0
  %264 = vmatprep.mubr.bf16.mxu0 0
  %265 = vmatmul.mubr.bf16.gmra.mrb[0].mxu0 %v17
  %v266 = vpop.f32.mrb[0].mxu0
  %v267 = vadd.f32 %v55, %v266
  %v268 = vpop.f32.mrb[0].mxu0
  %v269 = vadd.f32 %v59, %v268
  %v270 = vpop.f32.mrb[0].mxu0
  %v271 = vpop.f32.mrb[0].mxu0
  %272 = vdwg.mxu0
  %273 = vmatprep.subr.bf16.mxu0 %v171
  %274 = vmatpush1.bf16.msra.mxu0 %v170
  %275 = vmatprep.subr.bf16.mxu0 %v175
  %276 = vmatpush1.bf16.msra.mxu0 %v174
  %277 = vmatprep.subr.bf16.mxu0 %v179
  %278 = vmatpush1.bf16.msra.mxu0 %v178
  %279 = vmatprep.subr.bf16.mxu0 %v183
  %280 = vmatpush1.bf16.msra.mxu0 %v182
  %281 = vmatprep.subr.bf16.mxu0 %v187
  %282 = vmatpush1.bf16.msra.mxu0 %v186
  %283 = vmatprep.subr.bf16.mxu0 %v191
  %284 = vmatpush1.bf16.msra.mxu0 %v190
  %285 = vmatprep.subr.bf16.mxu0 %v195
  %286 = vmatpush1.bf16.msra.mxu0 %v194
  %287 = vmatprep.subr.bf16.mxu0 %v199
  %288 = vmatpush1.bf16.msra.mxu0 %v198
  %289 = vmatprep.subr.bf16.mxu0 0
  %290 = vmatpush1.bf16.msra.mxu0 0
  %291 = vmatprep.subr.bf16.mxu0 0
  %292 = vmatpush1.bf16.msra.mxu0 0
  %293 = vmatprep.subr.bf16.mxu0 0
  %294 = vmatpush1.bf16.msra.mxu0 0
  %295 = vmatprep.subr.bf16.mxu0 0
  %296 = vmatpush1.bf16.msra.mxu0 0
  %297 = vmatprep.subr.bf16.mxu0 0
  %298 = vmatpush1.bf16.msra.mxu0 0
  %299 = vmatprep.subr.bf16.mxu0 0
  %300 = vmatpush1.bf16.msra.mxu0 0
  %301 = vmatprep.subr.bf16.mxu0 0
  %302 = vmatpush1.bf16.msra.mxu0 0
  %303 = vmatprep.subr.bf16.mxu0 0
  %304 = vmatpush1.bf16.msra.mxu0 0
  %305 = vmatprep.mubr.bf16.mxu0 0
  %306 = vmatmul.mubr.bf16.gmra.mrb[0].mxu0 %v17
  %v307 = vpop.f32.mrb[0].mxu0
  %v308 = vadd.f32 %v63, %v307
  %v309 = vpop.f32.mrb[0].mxu0
  %v310 = vadd.f32 %v67, %v309
  %v311 = vpop.f32.mrb[0].mxu0
  %v312 = vpop.f32.mrb[0].mxu0
  %313 = vdwg.mxu0
  %v314 = vmax.f32 %v267, 0.0
  %v315 = vmax.f32 %v269, 0.0
  %v316 = vmax.f32 %v308, 0.0
  %v317 = vmax.f32 %v310, 0.0
  %p318 = scmp.eq.s32.totalorder 0, 0
  // Predicated region
  $region14: #{_lambda_.3} parent=0 // pred_check
    %p319 = pneg %p318
  $region15: #{_lambda_.3} parent=0 // pred_check_branch
    %321 = sbr.rel (%p319) target = $region17
  $region16: #{_lambda_.3} parent=0 // pred_region
    %v322 = vlaneseq
    %vm323 = vcmp.ge.s32.totalorder %v322, 0
    %vm324 = vcmp.lt.s32.totalorder %v322, 512
    %vm325 = vmand %vm323, %vm324
    %326 = vst.msk [vmem:[%s3] sm:$0xf] %vm325, 0.0
    %327 = vst.msk [vmem:[%s4] sm:$0xf] %vm325, 0.0
  $region17: #{_lambda_.3} parent=0 // pred_fallthru
    _
  %s328 = smul.u32 0, 8
  %v329 = vlaneseq
  %v330 = vshrl.u32 %v329, 7
  %v331 = vstv %s328
  %v332 = vadd.s32 %v331, %v330
  %vm333 = vcmp.lt.s32.totalorder %v332, 8
  %v334 = vsel %vm333, 1, 0
  %vm335 = vcmp.eq.s32.totalorder %v334, 1
  %v336 = vsel %vm335, %v314, 0.0
  %v337 = vsel %vm335, %v315, 0.0
  %v338 = vsel %vm335, %v316, 0.0
  %v339 = vsel %vm335, %v317, 0.0
  %v340 = vld [vmem:[%s3] sm:$0xf]
  %v341 = vrot.slane %v336, 4
  %v342 = vadd.f32 %v336, %v341
  %v343 = vrot.slane %v342, 2
  %v344 = vadd.f32 %v342, %v343
  %v345 = vrot.slane %v344, 1
  %v346 = vadd.f32 %v344, %v345
  %v347 = vrot.slane %v337, 4
  %v348 = vadd.f32 %v337, %v347
  %v349 = vrot.slane %v348, 2
  %v350 = vadd.f32 %v348, %v349
  %v351 = vrot.slane %v350, 1
  %v352 = vadd.f32 %v350, %v351
  %v353 = vrot.slane %v338, 4
  %v354 = vadd.f32 %v338, %v353
  %v355 = vrot.slane %v354, 2
  %v356 = vadd.f32 %v354, %v355
  %v357 = vrot.slane %v356, 1
  %v358 = vadd.f32 %v356, %v357
  %v359 = vrot.slane %v339, 4
  %v360 = vadd.f32 %v339, %v359
  %v361 = vrot.slane %v360, 2
  %v362 = vadd.f32 %v360, %v361
  %v363 = vrot.slane %v362, 1
  %v364 = vadd.f32 %v362, %v363
  %v369 = vcombine.low %v346, %v352
  %v370 = vcombine.low %v358, %v364
  %v372 = vunpack.c.l.s4 1966171168
  %v373 = vunpack.c.0.s8 %v372
  %v374 = vlaneseq
  %v375 = vshrl.u32 %v374, 7
  %v376 = vsub.s32 %v373, %v375
  %v377 = vrot.slane %v369, %v376
  %v379 = vunpack.c.l.s4 1966171168
  %v380 = vunpack.c.0.s8 %v379
  %v381 = vlaneseq
  %v382 = vshrl.u32 %v381, 7
  %v383 = vsub.s32 %v380, %v382
  %v384 = vrot.slane %v370, %v383
  %v385 = vcombine.low %v377, %v384
  %v387 = vunpack.c.l.s4 1966171168
  %v388 = vunpack.c.0.s8 %v387
  %v389 = vlaneseq
  %v390 = vshrl.u32 %v389, 7
  %v391 = vsub.s32 %v388, %v390
  %v392 = vrot.slane %v385, %v391
  %v394 = vadd.f32 %v340, %v392
  %v395 = vlaneseq
  %vm396 = vcmp.ge.s32.totalorder %v395, 0
  %vm397 = vcmp.lt.s32.totalorder %v395, 512
  %vm398 = vmand %vm396, %vm397
  %399 = vst.msk [vmem:[%s3] sm:$0xf] %vm398, %v394
  %v400 = vld [vmem:[%s4] sm:$0xf]
  %v401 = vmul.f32 %v336, %v336
  %v402 = vmul.f32 %v337, %v337
  %v403 = vmul.f32 %v338, %v338
  %v404 = vmul.f32 %v339, %v339
  %v405 = vrot.slane %v401, 4
  %v406 = vadd.f32 %v401, %v405
  %v407 = vrot.slane %v406, 2
  %v408 = vadd.f32 %v406, %v407
  %v409 = vrot.slane %v408, 1
  %v410 = vadd.f32 %v408, %v409
  %v411 = vrot.slane %v402, 4
  %v412 = vadd.f32 %v402, %v411
  %v413 = vrot.slane %v412, 2
  %v414 = vadd.f32 %v412, %v413
  %v415 = vrot.slane %v414, 1
  %v416 = vadd.f32 %v414, %v415
  %v417 = vrot.slane %v403, 4
  %v418 = vadd.f32 %v403, %v417
  %v419 = vrot.slane %v418, 2
  %v420 = vadd.f32 %v418, %v419
  %v421 = vrot.slane %v420, 1
  %v422 = vadd.f32 %v420, %v421
  %v423 = vrot.slane %v404, 4
  %v424 = vadd.f32 %v404, %v423
  %v425 = vrot.slane %v424, 2
  %v426 = vadd.f32 %v424, %v425
  %v427 = vrot.slane %v426, 1
  %v428 = vadd.f32 %v426, %v427
  %v433 = vcombine.low %v410, %v416
  %v434 = vcombine.low %v422, %v428
  %v436 = vunpack.c.l.s4 1966171168
  %v437 = vunpack.c.0.s8 %v436
  %v438 = vlaneseq
  %v439 = vshrl.u32 %v438, 7
  %v440 = vsub.s32 %v437, %v439
  %v441 = vrot.slane %v433, %v440
  %v443 = vunpack.c.l.s4 1966171168
  %v444 = vunpack.c.0.s8 %v443
  %v445 = vlaneseq
  %v446 = vshrl.u32 %v445, 7
  %v447 = vsub.s32 %v444, %v446
  %v448 = vrot.slane %v434, %v447
  %v449 = vcombine.low %v441, %v448
  %v451 = vunpack.c.l.s4 1966171168
  %v452 = vunpack.c.0.s8 %v451
  %v453 = vlaneseq
  %v454 = vshrl.u32 %v453, 7
  %v455 = vsub.s32 %v452, %v454
  %v456 = vrot.slane %v449, %v455
  %v458 = vadd.f32 %v400, %v456
  %459 = vst.msk [vmem:[%s4] sm:$0xf] %vm398, %v458
  // Predicated region
  $region18: #{_lambda_.3} parent=0 // pred_check
    _
  $region19: #{_lambda_.3} parent=0 // pred_check_branch
    %461 = sbr.rel (0) target = $region21
  $region20: #{_lambda_.3} parent=0 // pred_region
    _
  $region21: #{_lambda_.3} parent=0 // pred_fallthru
    _
  // Predicated region
  $region22: #{_lambda_.3} parent=0 // pred_check
    _
  $region23: #{_lambda_.3} parent=0 // pred_check_branch
    %463 = sbr.rel (0) target = $region25
  $region24: #{_lambda_.3} parent=0 // pred_region
    _
  $region25: #{_lambda_.3} parent=0 // pred_fallthru
    _
  // Predicated region
  $region26: #{_lambda_.3} parent=0 // pred_check
    _
  $region27: #{_lambda_.3} parent=0 // pred_check_branch
    %465 = sbr.rel (0) target = $region29
  $region28: #{_lambda_.3} parent=0 // pred_region
    _
  $region29: #{_lambda_.3} parent=0 // pred_fallthru
    _
  // Predicated region
  $region30: #{_lambda_.3} parent=0 // pred_check
    _
  $region31: #{_lambda_.3} parent=0 // pred_check_branch
    %467 = sbr.rel (0) target = $region33
  $region32: #{_lambda_.3} parent=0 // pred_region
    _
  $region33: #{_lambda_.3} parent=0 // pred_fallthru
    _

// kernel: _lambda_.4
$region0: #{_lambda_.4}
  #allocation0 [shape = 'u32[]', space=smem, size = 0x4, offset = 0x4, fixed_abs, tag = 'smem constant byte address 0x4 - core index']
  #allocation1 [shape = 'u32[144,128]{1,0:T(1,128)}', space=vmem, size = 0x12000, scoped, tag = 'internal scratch']
  %s0 = inlined_call_operand.vmem [shape: bf16[8,128], index: 0, kind: input, shape index: {}]
  %s1 = inlined_call_operand.vmem [shape: bf16[128,512], index: 1, kind: input, shape index: {}]
  %s2 = inlined_call_operand.vmem [shape: f32[1,512], index: 2, kind: input, shape index: {}]
  %s3 = inlined_call_operand.vmem [shape: bf16[512,128], index: 3, kind: input, shape index: {}]
  %s4 = inlined_call_operand.vmem [shape: f32[1,128], index: 4, kind: input, shape index: {}]
  %s5 = inlined_call_operand.vmem [shape: f32[1,128], index: 5, kind: output, shape index: {0}]
  %s6 = inlined_call_operand.vmem [shape: f32[1,128], index: 6, kind: output, shape index: {1}]
  %7 = xla_tuple %s5, %s6
  %s8 = sld [smem:[#allocation0]]
  $region42: #{_lambda_.4} parent=0
    _
  %s10 = ssub.s32 1, %s8
  %s11 = scalar_select 0, %s10, %s8
  // Predicated region
  $region2: #{_lambda_.4} parent=0 // pred_check
    _
  $region3: #{_lambda_.4} parent=0 // pred_check_branch
    %13 = sbr.rel (0) target = $region5
  $region4: #{_lambda_.4} parent=0 // pred_region
    _
  $region5: #{_lambda_.4} parent=0 // pred_fallthru
    _
  // Predicated region
  $region6: #{_lambda_.4} parent=0 // pred_check
    _
  $region7: #{_lambda_.4} parent=0 // pred_check_branch
    %15 = sbr.rel (0) target = $region9
  $region8: #{_lambda_.4} parent=0 // pred_region
    _
  $region9: #{_lambda_.4} parent=0 // pred_fallthru
    _
  // Predicated region
  $region10: #{_lambda_.4} parent=0 // pred_check
    _
  $region11: #{_lambda_.4} parent=0 // pred_check_branch
    %17 = sbr.rel (0) target = $region13
  $region12: #{_lambda_.4} parent=0 // pred_region
    _
  $region13: #{_lambda_.4} parent=0 // pred_fallthru
    _
  // Predicated region
  $region14: #{_lambda_.4} parent=0 // pred_check
    _
  $region15: #{_lambda_.4} parent=0 // pred_check_branch
    %19 = sbr.rel (0) target = $region17
  $region16: #{_lambda_.4} parent=0 // pred_region
    _
  $region17: #{_lambda_.4} parent=0 // pred_fallthru
    _
  // Predicated region
  $region18: #{_lambda_.4} parent=0 // pred_check
    _
  $region19: #{_lambda_.4} parent=0 // pred_check_branch
    %21 = sbr.rel (0) target = $region21
  $region20: #{_lambda_.4} parent=0 // pred_region
    _
  $region21: #{_lambda_.4} parent=0 // pred_fallthru
    _
  %v23 = vld [vmem:[%s0] sm:$0xf]
  %v24 = vld [vmem:[%s1] sm:$0xff]
  %v25 = vld [vmem:[%s1 + $0x8] sm:$0xff]
  %v26 = vld [vmem:[%s1 + $0x10] sm:$0xff]
  %v27 = vld [vmem:[%s1 + $0x18] sm:$0xff]
  %v28 = vld [vmem:[%s1 + $0x20] sm:$0xff]
  %v29 = vld [vmem:[%s1 + $0x28] sm:$0xff]
  %v30 = vld [vmem:[%s1 + $0x30] sm:$0xff]
  %v31 = vld [vmem:[%s1 + $0x38] sm:$0xff]
  %v32 = vld [vmem:[%s1 + $0x40] sm:$0xff]
  %v33 = vld [vmem:[%s1 + $0x48] sm:$0xff]
  %v34 = vld [vmem:[%s1 + $0x50] sm:$0xff]
  %v35 = vld [vmem:[%s1 + $0x58] sm:$0xff]
  %v36 = vld [vmem:[%s1 + $0x60] sm:$0xff]
  %v37 = vld [vmem:[%s1 + $0x68] sm:$0xff]
  %v38 = vld [vmem:[%s1 + $0x70] sm:$0xff]
  %v39 = vld [vmem:[%s1 + $0x78] sm:$0xff]
  %v40 = vld [vmem:[%s1 + $0x80] sm:$0xff]
  %v41 = vld [vmem:[%s1 + $0x88] sm:$0xff]
  %v42 = vld [vmem:[%s1 + $0x90] sm:$0xff]
  %v43 = vld [vmem:[%s1 + $0x98] sm:$0xff]
  %v44 = vld [vmem:[%s1 + $0xa0] sm:$0xff]
  %v45 = vld [vmem:[%s1 + $0xa8] sm:$0xff]
  %v46 = vld [vmem:[%s1 + $0xb0] sm:$0xff]
  %v47 = vld [vmem:[%s1 + $0xb8] sm:$0xff]
  %v48 = vld [vmem:[%s1 + $0xc0] sm:$0xff]
  %v49 = vld [vmem:[%s1 + $0xc8] sm:$0xff]
  %v50 = vld [vmem:[%s1 + $0xd0] sm:$0xff]
  %v51 = vld [vmem:[%s1 + $0xd8] sm:$0xff]
  %v52 = vld [vmem:[%s1 + $0xe0] sm:$0xff]
  %v53 = vld [vmem:[%s1 + $0xe8] sm:$0xff]
  %v54 = vld [vmem:[%s1 + $0xf0] sm:$0xff]
  %v55 = vld [vmem:[%s1 + $0xf8] sm:$0xff]
  %v56 = vld [vmem:[%s2] sm:$0xf]
  %v58 = vlaneseq
  %v59 = vshrl.u32 %v58, 7
  %v60 = vsub.s32 0, %v59
  %v61 = vrot.slane %v56, %v60
  %v62 = vlaneseq
  %v63 = vshrl.u32 %v62, 7
  %v64 = vsub.s32 1, %v63
  %v65 = vrot.slane %v56, %v64
  %v66 = vlaneseq
  %v67 = vshrl.u32 %v66, 7
  %v68 = vsub.s32 2, %v67
  %v69 = vrot.slane %v56, %v68
  %v70 = vlaneseq
  %v71 = vshrl.u32 %v70, 7
  %v72 = vsub.s32 3, %v71
  %v73 = vrot.slane %v56, %v72
  %v110 = vunpack.c.l.b16 %v24
  %v111 = vunpack.c.h.b16 %v24
  %v112 = vunpack.c.l.b16 %v25
  %v113 = vunpack.c.h.b16 %v25
  %v114 = vunpack.c.l.b16 %v26
  %v115 = vunpack.c.h.b16 %v26
  %v116 = vunpack.c.l.b16 %v27
  %v117 = vunpack.c.h.b16 %v27
  %v118 = vunpack.c.l.b16 %v28
  %v119 = vunpack.c.h.b16 %v28
  %v120 = vunpack.c.l.b16 %v29
  %v121 = vunpack.c.h.b16 %v29
  %v122 = vunpack.c.l.b16 %v30
  %v123 = vunpack.c.h.b16 %v30
  %v124 = vunpack.c.l.b16 %v31
  %v125 = vunpack.c.h.b16 %v31
  %v126 = vunpack.c.l.b16 %v32
  %v127 = vunpack.c.h.b16 %v32
  %v128 = vunpack.c.l.b16 %v33
  %v129 = vunpack.c.h.b16 %v33
  %v130 = vunpack.c.l.b16 %v34
  %v131 = vunpack.c.h.b16 %v34
  %v132 = vunpack.c.l.b16 %v35
  %v133 = vunpack.c.h.b16 %v35
  %v134 = vunpack.c.l.b16 %v36
  %v135 = vunpack.c.h.b16 %v36
  %v136 = vunpack.c.l.b16 %v37
  %v137 = vunpack.c.h.b16 %v37
  %v138 = vunpack.c.l.b16 %v38
  %v139 = vunpack.c.h.b16 %v38
  %v140 = vunpack.c.l.b16 %v39
  %v141 = vunpack.c.h.b16 %v39
  %v142 = vunpack.c.l.b16 %v40
  %v143 = vunpack.c.h.b16 %v40
  %v144 = vunpack.c.l.b16 %v41
  %v145 = vunpack.c.h.b16 %v41
  %v146 = vunpack.c.l.b16 %v42
  %v147 = vunpack.c.h.b16 %v42
  %v148 = vunpack.c.l.b16 %v43
  %v149 = vunpack.c.h.b16 %v43
  %v150 = vunpack.c.l.b16 %v44
  %v151 = vunpack.c.h.b16 %v44
  %v152 = vunpack.c.l.b16 %v45
  %v153 = vunpack.c.h.b16 %v45
  %v154 = vunpack.c.l.b16 %v46
  %v155 = vunpack.c.h.b16 %v46
  %v156 = vunpack.c.l.b16 %v47
  %v157 = vunpack.c.h.b16 %v47
  %v158 = vunpack.c.l.b16 %v48
  %v159 = vunpack.c.h.b16 %v48
  %v160 = vunpack.c.l.b16 %v49
  %v161 = vunpack.c.h.b16 %v49
  %v162 = vunpack.c.l.b16 %v50
  %v163 = vunpack.c.h.b16 %v50
  %v164 = vunpack.c.l.b16 %v51
  %v165 = vunpack.c.h.b16 %v51
  %v166 = vunpack.c.l.b16 %v52
  %v167 = vunpack.c.h.b16 %v52
  %v168 = vunpack.c.l.b16 %v53
  %v169 = vunpack.c.h.b16 %v53
  %v170 = vunpack.c.l.b16 %v54
  %v171 = vunpack.c.h.b16 %v54
  %v172 = vunpack.c.l.b16 %v55
  %v173 = vunpack.c.h.b16 %v55
  %v174 = vpack.c.b16 %v114, %v110
  %v175 = vpack.c.b16 %v115, %v111
  %v176 = vpack.c.b16 %v116, %v112
  %v177 = vpack.c.b16 %v117, %v113
  %v178 = vpack.c.b16 %v122, %v118
  %v179 = vpack.c.b16 %v123, %v119
  %v180 = vpack.c.b16 %v124, %v120
  %v181 = vpack.c.b16 %v125, %v121
  %v182 = vpack.c.b16 %v130, %v126
  %v183 = vpack.c.b16 %v131, %v127
  %v184 = vpack.c.b16 %v132, %v128
  %v185 = vpack.c.b16 %v133, %v129
  %v186 = vpack.c.b16 %v138, %v134
  %v187 = vpack.c.b16 %v139, %v135
  %v188 = vpack.c.b16 %v140, %v136
  %v189 = vpack.c.b16 %v141, %v137
  %v190 = vpack.c.b16 %v146, %v142
  %v191 = vpack.c.b16 %v147, %v143
  %v192 = vpack.c.b16 %v148, %v144
  %v193 = vpack.c.b16 %v149, %v145
  %v194 = vpack.c.b16 %v154, %v150
  %v195 = vpack.c.b16 %v155, %v151
  %v196 = vpack.c.b16 %v156, %v152
  %v197 = vpack.c.b16 %v157, %v153
  %v198 = vpack.c.b16 %v162, %v158
  %v199 = vpack.c.b16 %v163, %v159
  %v200 = vpack.c.b16 %v164, %v160
  %v201 = vpack.c.b16 %v165, %v161
  %v202 = vpack.c.b16 %v170, %v166
  %v203 = vpack.c.b16 %v171, %v167
  %v204 = vpack.c.b16 %v172, %v168
  %v205 = vpack.c.b16 %v173, %v169
  %238 = vmatprep.subr.bf16.mxu0 %v175
  %239 = vmatpush1.bf16.msra.mxu0 %v174
  %240 = vmatprep.subr.bf16.mxu0 %v179
  %241 = vmatpush1.bf16.msra.mxu0 %v178
  %242 = vmatprep.subr.bf16.mxu0 %v183
  %243 = vmatpush1.bf16.msra.mxu0 %v182
  %244 = vmatprep.subr.bf16.mxu0 %v187
  %245 = vmatpush1.bf16.msra.mxu0 %v186
  %246 = vmatprep.subr.bf16.mxu0 %v191
  %247 = vmatpush1.bf16.msra.mxu0 %v190
  %248 = vmatprep.subr.bf16.mxu0 %v195
  %249 = vmatpush1.bf16.msra.mxu0 %v194
  %250 = vmatprep.subr.bf16.mxu0 %v199
  %251 = vmatpush1.bf16.msra.mxu0 %v198
  %252 = vmatprep.subr.bf16.mxu0 %v203
  %253 = vmatpush1.bf16.msra.mxu0 %v202
  %254 = vmatprep.subr.bf16.mxu0 0
  %255 = vmatpush1.bf16.msra.mxu0 0
  %256 = vmatprep.subr.bf16.mxu0 0
  %257 = vmatpush1.bf16.msra.mxu0 0
  %258 = vmatprep.subr.bf16.mxu0 0
  %259 = vmatpush1.bf16.msra.mxu0 0
  %260 = vmatprep.subr.bf16.mxu0 0
  %261 = vmatpush1.bf16.msra.mxu0 0
  %262 = vmatprep.subr.bf16.mxu0 0
  %263 = vmatpush1.bf16.msra.mxu0 0
  %264 = vmatprep.subr.bf16.mxu0 0
  %265 = vmatpush1.bf16.msra.mxu0 0
  %266 = vmatprep.subr.bf16.mxu0 0
  %267 = vmatpush1.bf16.msra.mxu0 0
  %268 = vmatprep.subr.bf16.mxu0 0
  %269 = vmatpush1.bf16.msra.mxu0 0
  %270 = vmatprep.mubr.bf16.mxu0 0
  %271 = vmatmul.mubr.bf16.gmra.mrb[0].mxu0 %v23
  %v272 = vpop.f32.mrb[0].mxu0
  %v273 = vadd.f32 %v61, %v272
  %v274 = vpop.f32.mrb[0].mxu0
  %v275 = vadd.f32 %v65, %v274
  %v276 = vpop.f32.mrb[0].mxu0
  %v277 = vpop.f32.mrb[0].mxu0
  %278 = vdwg.mxu0
  %279 = vmatprep.subr.bf16.mxu0 %v177
  %280 = vmatpush1.bf16.msra.mxu0 %v176
  %281 = vmatprep.subr.bf16.mxu0 %v181
  %282 = vmatpush1.bf16.msra.mxu0 %v180
  %283 = vmatprep.subr.bf16.mxu0 %v185
  %284 = vmatpush1.bf16.msra.mxu0 %v184
  %285 = vmatprep.subr.bf16.mxu0 %v189
  %286 = vmatpush1.bf16.msra.mxu0 %v188
  %287 = vmatprep.subr.bf16.mxu0 %v193
  %288 = vmatpush1.bf16.msra.mxu0 %v192
  %289 = vmatprep.subr.bf16.mxu0 %v197
  %290 = vmatpush1.bf16.msra.mxu0 %v196
  %291 = vmatprep.subr.bf16.mxu0 %v201
  %292 = vmatpush1.bf16.msra.mxu0 %v200
  %293 = vmatprep.subr.bf16.mxu0 %v205
  %294 = vmatpush1.bf16.msra.mxu0 %v204
  %295 = vmatprep.subr.bf16.mxu0 0
  %296 = vmatpush1.bf16.msra.mxu0 0
  %297 = vmatprep.subr.bf16.mxu0 0
  %298 = vmatpush1.bf16.msra.mxu0 0
  %299 = vmatprep.subr.bf16.mxu0 0
  %300 = vmatpush1.bf16.msra.mxu0 0
  %301 = vmatprep.subr.bf16.mxu0 0
  %302 = vmatpush1.bf16.msra.mxu0 0
  %303 = vmatprep.subr.bf16.mxu0 0
  %304 = vmatpush1.bf16.msra.mxu0 0
  %305 = vmatprep.subr.bf16.mxu0 0
  %306 = vmatpush1.bf16.msra.mxu0 0
  %307 = vmatprep.subr.bf16.mxu0 0
  %308 = vmatpush1.bf16.msra.mxu0 0
  %309 = vmatprep.subr.bf16.mxu0 0
  %310 = vmatpush1.bf16.msra.mxu0 0
  %311 = vmatprep.mubr.bf16.mxu0 0
  %312 = vmatmul.mubr.bf16.gmra.mrb[0].mxu0 %v23
  %v313 = vpop.f32.mrb[0].mxu0
  %v314 = vadd.f32 %v69, %v313
  %v315 = vpop.f32.mrb[0].mxu0
  %v316 = vadd.f32 %v73, %v315
  %v317 = vpop.f32.mrb[0].mxu0
  %v318 = vpop.f32.mrb[0].mxu0
  %319 = vdwg.mxu0
  %v320 = vmax.f32 %v273, 0.0
  %v321 = vmax.f32 %v275, 0.0
  %v322 = vmax.f32 %v314, 0.0
  %v323 = vmax.f32 %v316, 0.0
  %v324 = vpack.c.bf16 %v320, %v320
  %v325 = vpack.c.bf16 %v321, %v321
  %v326 = vpack.c.bf16 %v322, %v322
  %v327 = vpack.c.bf16 %v323, %v323
  %v328 = vld [vmem:[%s3] sm:$0xf]
  %v329 = vld [vmem:[%s3 + $0x4] sm:$0xf]
  %v330 = vld [vmem:[%s3 + $0x8] sm:$0xf]
  %v331 = vld [vmem:[%s3 + $0xc] sm:$0xf]
  %v332 = vld [vmem:[%s3 + $0x10] sm:$0xf]
  %v333 = vld [vmem:[%s3 + $0x14] sm:$0xf]
  %v334 = vld [vmem:[%s3 + $0x18] sm:$0xf]
  %v335 = vld [vmem:[%s3 + $0x1c] sm:$0xf]
  %v336 = vld [vmem:[%s3 + $0x20] sm:$0xf]
  %v337 = vld [vmem:[%s3 + $0x24] sm:$0xf]
  %v338 = vld [vmem:[%s3 + $0x28] sm:$0xf]
  %v339 = vld [vmem:[%s3 + $0x2c] sm:$0xf]
  %v340 = vld [vmem:[%s3 + $0x30] sm:$0xf]
  %v341 = vld [vmem:[%s3 + $0x34] sm:$0xf]
  %v342 = vld [vmem:[%s3 + $0x38] sm:$0xf]
  %v343 = vld [vmem:[%s3 + $0x3c] sm:$0xf]
  %v344 = vld [vmem:[%s3 + $0x40] sm:$0xf]
  %v345 = vld [vmem:[%s3 + $0x44] sm:$0xf]
  %v346 = vld [vmem:[%s3 + $0x48] sm:$0xf]
  %v347 = vld [vmem:[%s3 + $0x4c] sm:$0xf]
  %v348 = vld [vmem:[%s3 + $0x50] sm:$0xf]
  %v349 = vld [vmem:[%s3 + $0x54] sm:$0xf]
  %v350 = vld [vmem:[%s3 + $0x58] sm:$0xf]
  %v351 = vld [vmem:[%s3 + $0x5c] sm:$0xf]
  %v352 = vld [vmem:[%s3 + $0x60] sm:$0xf]
  %v353 = vld [vmem:[%s3 + $0x64] sm:$0xf]
  %v354 = vld [vmem:[%s3 + $0x68] sm:$0xf]
  %v355 = vld [vmem:[%s3 + $0x6c] sm:$0xf]
  %v356 = vld [vmem:[%s3 + $0x70] sm:$0xf]
  %v357 = vld [vmem:[%s3 + $0x74] sm:$0xf]
  %v358 = vld [vmem:[%s3 + $0x78] sm:$0xf]
  %v359 = vld [vmem:[%s3 + $0x7c] sm:$0xf]
  %v360 = vld [vmem:[%s3 + $0x80] sm:$0xf]
  %v361 = vld [vmem:[%s3 + $0x84] sm:$0xf]
  %v362 = vld [vmem:[%s3 + $0x88] sm:$0xf]
  %v363 = vld [vmem:[%s3 + $0x8c] sm:$0xf]
  %v364 = vld [vmem:[%s3 + $0x90] sm:$0xf]
  %v365 = vld [vmem:[%s3 + $0x94] sm:$0xf]
  %v366 = vld [vmem:[%s3 + $0x98] sm:$0xf]
  %v367 = vld [vmem:[%s3 + $0x9c] sm:$0xf]
  %v368 = vld [vmem:[%s3 + $0xa0] sm:$0xf]
  %v369 = vld [vmem:[%s3 + $0xa4] sm:$0xf]
  %v370 = vld [vmem:[%s3 + $0xa8] sm:$0xf]
  %v371 = vld [vmem:[%s3 + $0xac] sm:$0xf]
  %v372 = vld [vmem:[%s3 + $0xb0] sm:$0xf]
  %v373 = vld [vmem:[%s3 + $0xb4] sm:$0xf]
  %v374 = vld [vmem:[%s3 + $0xb8] sm:$0xf]
  %v375 = vld [vmem:[%s3 + $0xbc] sm:$0xf]
  %v376 = vld [vmem:[%s3 + $0xc0] sm:$0xf]
  %v377 = vld [vmem:[%s3 + $0xc4] sm:$0xf]
  %v378 = vld [vmem:[%s3 + $0xc8] sm:$0xf]
  %v379 = vld [vmem:[%s3 + $0xcc] sm:$0xf]
  %v380 = vld [vmem:[%s3 + $0xd0] sm:$0xf]
  %v381 = vld [vmem:[%s3 + $0xd4] sm:$0xf]
  %v382 = vld [vmem:[%s3 + $0xd8] sm:$0xf]
  %v383 = vld [vmem:[%s3 + $0xdc] sm:$0xf]
  %v384 = vld [vmem:[%s3 + $0xe0] sm:$0xf]
  %v385 = vld [vmem:[%s3 + $0xe4] sm:$0xf]
  %v386 = vld [vmem:[%s3 + $0xe8] sm:$0xf]
  %v387 = vld [vmem:[%s3 + $0xec] sm:$0xf]
  %v388 = vld [vmem:[%s3 + $0xf0] sm:$0xf]
  %v389 = vld [vmem:[%s3 + $0xf4] sm:$0xf]
  %v390 = vld [vmem:[%s3 + $0xf8] sm:$0xf]
  %v391 = vld [vmem:[%s3 + $0xfc] sm:$0xf]
  %v392 = vld [vmem:[%s4] sm:$0x1]
  %v394 = vlaneseq
  %v395 = vshrl.u32 %v394, 7
  %v396 = vsub.s32 0, %v395
  %v397 = vrot.slane %v392, %v396
  %v463 = vunpack.c.l.b16 %v328
  %v464 = vunpack.c.l.b16 %v329
  %v465 = vunpack.c.l.b16 %v330
  %v466 = vunpack.c.l.b16 %v331
  %v467 = vunpack.c.l.b16 %v332
  %v468 = vunpack.c.l.b16 %v333
  %v469 = vunpack.c.l.b16 %v334
  %v470 = vunpack.c.l.b16 %v335
  %v471 = vunpack.c.l.b16 %v336
  %v472 = vunpack.c.l.b16 %v337
  %v473 = vunpack.c.l.b16 %v338
  %v474 = vunpack.c.l.b16 %v339
  %v475 = vunpack.c.l.b16 %v340
  %v476 = vunpack.c.l.b16 %v341
  %v477 = vunpack.c.l.b16 %v342
  %v478 = vunpack.c.l.b16 %v343
  %v479 = vunpack.c.l.b16 %v344
  %v480 = vunpack.c.l.b16 %v345
  %v481 = vunpack.c.l.b16 %v346
  %v482 = vunpack.c.l.b16 %v347
  %v483 = vunpack.c.l.b16 %v348
  %v484 = vunpack.c.l.b16 %v349
  %v485 = vunpack.c.l.b16 %v350
  %v486 = vunpack.c.l.b16 %v351
  %v487 = vunpack.c.l.b16 %v352
  %v488 = vunpack.c.l.b16 %v353
  %v489 = vunpack.c.l.b16 %v354
  %v490 = vunpack.c.l.b16 %v355
  %v491 = vunpack.c.l.b16 %v356
  %v492 = vunpack.c.l.b16 %v357
  %v493 = vunpack.c.l.b16 %v358
  %v494 = vunpack.c.l.b16 %v359
  %v495 = vunpack.c.l.b16 %v360
  %v496 = vunpack.c.l.b16 %v361
  %v497 = vunpack.c.l.b16 %v362
  %v498 = vunpack.c.l.b16 %v363
  %v499 = vunpack.c.l.b16 %v364
  %v500 = vunpack.c.l.b16 %v365
  %v501 = vunpack.c.l.b16 %v366
  %v502 = vunpack.c.l.b16 %v367
  %v503 = vunpack.c.l.b16 %v368
  %v504 = vunpack.c.l.b16 %v369
  %v505 = vunpack.c.l.b16 %v370
  %v506 = vunpack.c.l.b16 %v371
  %v507 = vunpack.c.l.b16 %v372
  %v508 = vunpack.c.l.b16 %v373
  %v509 = vunpack.c.l.b16 %v374
  %v510 = vunpack.c.l.b16 %v375
  %v511 = vunpack.c.l.b16 %v376
  %v512 = vunpack.c.l.b16 %v377
  %v513 = vunpack.c.l.b16 %v378
  %v514 = vunpack.c.l.b16 %v379
  %v515 = vunpack.c.l.b16 %v380
  %v516 = vunpack.c.l.b16 %v381
  %v517 = vunpack.c.l.b16 %v382
  %v518 = vunpack.c.l.b16 %v383
  %v519 = vunpack.c.l.b16 %v384
  %v520 = vunpack.c.l.b16 %v385
  %v521 = vunpack.c.l.b16 %v386
  %v522 = vunpack.c.l.b16 %v387
  %v523 = vunpack.c.l.b16 %v388
  %v524 = vunpack.c.l.b16 %v389
  %v525 = vunpack.c.l.b16 %v390
  %v526 = vunpack.c.l.b16 %v391
  %v527 = vpack.c.b16 %v464, %v463
  %v528 = vpack.c.b16 %v466, %v465
  %v529 = vpack.c.b16 %v468, %v467
  %v530 = vpack.c.b16 %v470, %v469
  %v531 = vpack.c.b16 %v472, %v471
  %v532 = vpack.c.b16 %v474, %v473
  %v533 = vpack.c.b16 %v476, %v475
  %v534 = vpack.c.b16 %v478, %v477
  %v535 = vpack.c.b16 %v480, %v479
  %v536 = vpack.c.b16 %v482, %v481
  %v537 = vpack.c.b16 %v484, %v483
  %v538 = vpack.c.b16 %v486, %v485
  %v539 = vpack.c.b16 %v488, %v487
  %v540 = vpack.c.b16 %v490, %v489
  %v541 = vpack.c.b16 %v492, %v491
  %v542 = vpack.c.b16 %v494, %v493
  %v543 = vpack.c.b16 %v496, %v495
  %v544 = vpack.c.b16 %v498, %v497
  %v545 = vpack.c.b16 %v500, %v499
  %v546 = vpack.c.b16 %v502, %v501
  %v547 = vpack.c.b16 %v504, %v503
  %v548 = vpack.c.b16 %v506, %v505
  %v549 = vpack.c.b16 %v508, %v507
  %v550 = vpack.c.b16 %v510, %v509
  %v551 = vpack.c.b16 %v512, %v511
  %v552 = vpack.c.b16 %v514, %v513
  %v553 = vpack.c.b16 %v516, %v515
  %v554 = vpack.c.b16 %v518, %v517
  %v555 = vpack.c.b16 %v520, %v519
  %v556 = vpack.c.b16 %v522, %v521
  %v557 = vpack.c.b16 %v524, %v523
  %v558 = vpack.c.b16 %v526, %v525
  %591 = vmatprep.subr.bf16.mxu0 0
  %592 = vmatpush1.bf16.msra.mxu0 %v527
  %593 = vmatprep.subr.bf16.mxu0 0
  %594 = vmatpush1.bf16.msra.mxu0 %v528
  %595 = vmatprep.subr.bf16.mxu0 0
  %596 = vmatpush1.bf16.msra.mxu0 %v529
  %597 = vmatprep.subr.bf16.mxu0 0
  %598 = vmatpush1.bf16.msra.mxu0 %v530
  %599 = vmatprep.subr.bf16.mxu0 0
  %600 = vmatpush1.bf16.msra.mxu0 %v531
  %601 = vmatprep.subr.bf16.mxu0 0
  %602 = vmatpush1.bf16.msra.mxu0 %v532
  %603 = vmatprep.subr.bf16.mxu0 0
  %604 = vmatpush1.bf16.msra.mxu0 %v533
  %605 = vmatprep.subr.bf16.mxu0 0
  %606 = vmatpush1.bf16.msra.mxu0 %v534
  %607 = vmatprep.subr.bf16.mxu0 0
  %608 = vmatpush1.bf16.msra.mxu0 %v535
  %609 = vmatprep.subr.bf16.mxu0 0
  %610 = vmatpush1.bf16.msra.mxu0 %v536
  %611 = vmatprep.subr.bf16.mxu0 0
  %612 = vmatpush1.bf16.msra.mxu0 %v537
  %613 = vmatprep.subr.bf16.mxu0 0
  %614 = vmatpush1.bf16.msra.mxu0 %v538
  %615 = vmatprep.subr.bf16.mxu0 0
  %616 = vmatpush1.bf16.msra.mxu0 %v539
  %617 = vmatprep.subr.bf16.mxu0 0
  %618 = vmatpush1.bf16.msra.mxu0 %v540
  %619 = vmatprep.subr.bf16.mxu0 0
  %620 = vmatpush1.bf16.msra.mxu0 %v541
  %621 = vmatprep.subr.bf16.mxu0 0
  %622 = vmatpush1.bf16.msra.mxu0 %v542
  %623 = vmatprep.mubr.bf16.mxu0 %v325
  %624 = vmatmul.mubr.bf16.gmra.mrb[0].mxu0 %v324
  %v625 = vpop.f32.mrb[0].mxu0
  %v626 = vadd.f32 %v397, %v625
  %v627 = vpop.f32.mrb[0].mxu0
  %v628 = vpop.f32.mrb[0].mxu0
  %v629 = vpop.f32.mrb[0].mxu0
  %630 = vdwg.mxu0
  %631 = vmatprep.subr.bf16.mxu0 0
  %632 = vmatpush1.bf16.msra.mxu0 %v543
  %633 = vmatprep.subr.bf16.mxu0 0
  %634 = vmatpush1.bf16.msra.mxu0 %v544
  %635 = vmatprep.subr.bf16.mxu0 0
  %636 = vmatpush1.bf16.msra.mxu0 %v545
  %637 = vmatprep.subr.bf16.mxu0 0
  %638 = vmatpush1.bf16.msra.mxu0 %v546
  %639 = vmatprep.subr.bf16.mxu0 0
  %640 = vmatpush1.bf16.msra.mxu0 %v547
  %641 = vmatprep.subr.bf16.mxu0 0
  %642 = vmatpush1.bf16.msra.mxu0 %v548
  %643 = vmatprep.subr.bf16.mxu0 0
  %644 = vmatpush1.bf16.msra.mxu0 %v549
  %645 = vmatprep.subr.bf16.mxu0 0
  %646 = vmatpush1.bf16.msra.mxu0 %v550
  %647 = vmatprep.subr.bf16.mxu0 0
  %648 = vmatpush1.bf16.msra.mxu0 %v551
  %649 = vmatprep.subr.bf16.mxu0 0
  %650 = vmatpush1.bf16.msra.mxu0 %v552
  %651 = vmatprep.subr.bf16.mxu0 0
  %652 = vmatpush1.bf16.msra.mxu0 %v553
  %653 = vmatprep.subr.bf16.mxu0 0
  %654 = vmatpush1.bf16.msra.mxu0 %v554
  %655 = vmatprep.subr.bf16.mxu0 0
  %656 = vmatpush1.bf16.msra.mxu0 %v555
  %657 = vmatprep.subr.bf16.mxu0 0
  %658 = vmatpush1.bf16.msra.mxu0 %v556
  %659 = vmatprep.subr.bf16.mxu0 0
  %660 = vmatpush1.bf16.msra.mxu0 %v557
  %661 = vmatprep.subr.bf16.mxu0 0
  %662 = vmatpush1.bf16.msra.mxu0 %v558
  %663 = vmatprep.mubr.bf16.mxu0 %v327
  %664 = vmatmul.mubr.bf16.gmra.mrb[0].mxu0 %v326
  %v665 = vpop.f32.mrb[0].mxu0
  %v666 = vadd.f32 %v626, %v665
  %v667 = vpop.f32.mrb[0].mxu0
  %v668 = vpop.f32.mrb[0].mxu0
  %v669 = vpop.f32.mrb[0].mxu0
  %670 = vdwg.mxu0
  %v671 = vmax.f32 %v666, 0.0
  %p672 = scmp.eq.s32.totalorder 0, 0
  // Predicated region
  $region22: #{_lambda_.4} parent=0 // pred_check
    %p673 = pneg %p672
  $region23: #{_lambda_.4} parent=0 // pred_check_branch
    %675 = sbr.rel (%p673) target = $region25
  $region24: #{_lambda_.4} parent=0 // pred_region
    %676 = vst [vmem:[%s5] sm:$0x1] 0.0
    %677 = vst [vmem:[%s6] sm:$0x1] 0.0
  $region25: #{_lambda_.4} parent=0 // pred_fallthru
    _
  %s678 = smul.u32 0, 8
  %v679 = vlaneseq
  %v680 = vshrl.u32 %v679, 7
  %v681 = vstv %s678
  %v682 = vadd.s32 %v681, %v680
  %vm683 = vcmp.lt.s32.totalorder %v682, 8
  %v684 = vsel %vm683, 1, 0
  %vm685 = vcmp.eq.s32.totalorder %v684, 1
  %v686 = vsel %vm685, %v671, 0.0
  %v687 = vld [vmem:[%s5] sm:$0x1]
  %v688 = vrot.slane %v686, 4
  %v689 = vadd.f32 %v686, %v688
  %v690 = vrot.slane %v689, 2
  %v691 = vadd.f32 %v689, %v690
  %v692 = vrot.slane %v691, 1
  %v693 = vadd.f32 %v691, %v692
  %v694 = vadd.f32 %v687, %v693
  %695 = vst [vmem:[%s5] sm:$0x1] %v694
  %v696 = vld [vmem:[%s6] sm:$0x1]
  %v697 = vmul.f32 %v686, %v686
  %v698 = vrot.slane %v697, 4
  %v699 = vadd.f32 %v697, %v698
  %v700 = vrot.slane %v699, 2
  %v701 = vadd.f32 %v699, %v700
  %v702 = vrot.slane %v701, 1
  %v703 = vadd.f32 %v701, %v702
  %v704 = vadd.f32 %v696, %v703
  %705 = vst [vmem:[%s6] sm:$0x1] %v704
  // Predicated region
  $region26: #{_lambda_.4} parent=0 // pred_check
    _
  $region27: #{_lambda_.4} parent=0 // pred_check_branch
    %707 = sbr.rel (0) target = $region29
  $region28: #{_lambda_.4} parent=0 // pred_region
    _
  $region29: #{_lambda_.4} parent=0 // pred_fallthru
    _
  // Predicated region
  $region30: #{_lambda_.4} parent=0 // pred_check
    _
  $region31: #{_lambda_.4} parent=0 // pred_check_branch
    %709 = sbr.rel (0) target = $region33
  $region32: #{_lambda_.4} parent=0 // pred_region
    _
  $region33: #{_lambda_.4} parent=0 // pred_fallthru
    _
  // Predicated region
  $region34: #{_lambda_.4} parent=0 // pred_check
    _
  $region35: #{_lambda_.4} parent=0 // pred_check_branch
    %711 = sbr.rel (0) target = $region37
  $region36: #{_lambda_.4} parent=0 // pred_region
    _
  $region37: #{_lambda_.4} parent=0 // pred_fallthru
    _
  // Predicated region
  $region38: #{_lambda_.4} parent=0 // pred_check
    _
  $region39: #{_lambda_.4} parent=0 // pred_check_branch
    %713 = sbr.rel (0) target = $region41
  $region40: #{_lambda_.4} parent=0 // pred_region
    _
  $region41: #{_lambda_.4} parent=0 // pred_fallthru
    _

// kernel: _lambda_.5
$region0: #{_lambda_.5}
  #allocation0 [shape = 'u32[]', space=smem, size = 0x4, offset = 0x4, fixed_abs, tag = 'smem constant byte address 0x4 - core index']
  #allocation1 [shape = 'u32[144,128]{1,0:T(1,128)}', space=vmem, size = 0x12000, scoped, tag = 'internal scratch']
  %s0 = inlined_call_operand.vmem [shape: bf16[8,128], index: 0, kind: input, shape index: {}]
  %s1 = inlined_call_operand.vmem [shape: bf16[128,512], index: 1, kind: input, shape index: {}]
  %s2 = inlined_call_operand.vmem [shape: f32[1,512], index: 2, kind: input, shape index: {}]
  %s3 = inlined_call_operand.vmem [shape: bf16[512,128], index: 3, kind: input, shape index: {}]
  %s4 = inlined_call_operand.vmem [shape: f32[1,128], index: 4, kind: input, shape index: {}]
  %s5 = inlined_call_operand.vmem [shape: bf16[128,18], index: 5, kind: input, shape index: {}]
  %s6 = inlined_call_operand.vmem [shape: f32[1,18], index: 6, kind: input, shape index: {}]
  %s7 = inlined_call_operand.hbm [shape: f32[8,18], index: 7, kind: output, shape index: {}]
  %s8 = sld [smem:[#allocation0]]
  $region38: #{_lambda_.5} parent=0
    _
  %s10 = ssub.s32 1, %s8
  %s11 = scalar_select 0, %s10, %s8
  $region1: #{_lambda_.5} parent=0
    #allocation2 [shape = 'u8[4096]{0}', space=vmem, size = 0x1000, scoped, tag = 'output window, operand 0, single buffered']
    #allocation3 [shape = 's32[1]{0}', space=sflag, size = 0x4, scoped, tag = 'scoped memory for _lambda_.5']
    %12 = vsyncpa [#allocation3], 0
    // Predicated region
    $region2: #{_lambda_.5} parent=1 // pred_check
      _
    $region3: #{_lambda_.5} parent=1 // pred_check_branch
      %14 = sbr.rel (0) target = $region5
    $region4: #{_lambda_.5} parent=1 // pred_region
      _
    $region5: #{_lambda_.5} parent=1 // pred_fallthru
      _
    // Predicated region
    $region6: #{_lambda_.5} parent=1 // pred_check
      _
    $region7: #{_lambda_.5} parent=1 // pred_check_branch
      %16 = sbr.rel (0) target = $region9
    $region8: #{_lambda_.5} parent=1 // pred_region
      _
    $region9: #{_lambda_.5} parent=1 // pred_fallthru
      _
    // Predicated region
    $region10: #{_lambda_.5} parent=1 // pred_check
      _
    $region11: #{_lambda_.5} parent=1 // pred_check_branch
      %18 = sbr.rel (0) target = $region13
    $region12: #{_lambda_.5} parent=1 // pred_region
      _
    $region13: #{_lambda_.5} parent=1 // pred_fallthru
      _
    // Predicated region
    $region14: #{_lambda_.5} parent=1 // pred_check
      _
    $region15: #{_lambda_.5} parent=1 // pred_check_branch
      %20 = sbr.rel (0) target = $region17
    $region16: #{_lambda_.5} parent=1 // pred_region
      _
    $region17: #{_lambda_.5} parent=1 // pred_fallthru
      _
    // Predicated region
    $region18: #{_lambda_.5} parent=1 // pred_check
      _
    $region19: #{_lambda_.5} parent=1 // pred_check_branch
      %22 = sbr.rel (0) target = $region21
    $region20: #{_lambda_.5} parent=1 // pred_region
      _
    $region21: #{_lambda_.5} parent=1 // pred_fallthru
      _
    // Predicated region
    $region22: #{_lambda_.5} parent=1 // pred_check
      _
    $region23: #{_lambda_.5} parent=1 // pred_check_branch
      %24 = sbr.rel (0) target = $region25
    $region24: #{_lambda_.5} parent=1 // pred_region
      _
    $region25: #{_lambda_.5} parent=1 // pred_fallthru
      _
    // Predicated region
    $region26: #{_lambda_.5} parent=1 // pred_check
      _
    $region27: #{_lambda_.5} parent=1 // pred_check_branch
      %26 = sbr.rel (0) target = $region29
    $region28: #{_lambda_.5} parent=1 // pred_region
      _
    $region29: #{_lambda_.5} parent=1 // pred_fallthru
      _
    %v28 = vld [vmem:[%s0] sm:$0xf]
    %v29 = vld [vmem:[%s1] sm:$0xff]
    %v30 = vld [vmem:[%s1 + $0x8] sm:$0xff]
    %v31 = vld [vmem:[%s1 + $0x10] sm:$0xff]
    %v32 = vld [vmem:[%s1 + $0x18] sm:$0xff]
    %v33 = vld [vmem:[%s1 + $0x20] sm:$0xff]
    %v34 = vld [vmem:[%s1 + $0x28] sm:$0xff]
    %v35 = vld [vmem:[%s1 + $0x30] sm:$0xff]
    %v36 = vld [vmem:[%s1 + $0x38] sm:$0xff]
    %v37 = vld [vmem:[%s1 + $0x40] sm:$0xff]
    %v38 = vld [vmem:[%s1 + $0x48] sm:$0xff]
    %v39 = vld [vmem:[%s1 + $0x50] sm:$0xff]
    %v40 = vld [vmem:[%s1 + $0x58] sm:$0xff]
    %v41 = vld [vmem:[%s1 + $0x60] sm:$0xff]
    %v42 = vld [vmem:[%s1 + $0x68] sm:$0xff]
    %v43 = vld [vmem:[%s1 + $0x70] sm:$0xff]
    %v44 = vld [vmem:[%s1 + $0x78] sm:$0xff]
    %v45 = vld [vmem:[%s1 + $0x80] sm:$0xff]
    %v46 = vld [vmem:[%s1 + $0x88] sm:$0xff]
    %v47 = vld [vmem:[%s1 + $0x90] sm:$0xff]
    %v48 = vld [vmem:[%s1 + $0x98] sm:$0xff]
    %v49 = vld [vmem:[%s1 + $0xa0] sm:$0xff]
    %v50 = vld [vmem:[%s1 + $0xa8] sm:$0xff]
    %v51 = vld [vmem:[%s1 + $0xb0] sm:$0xff]
    %v52 = vld [vmem:[%s1 + $0xb8] sm:$0xff]
    %v53 = vld [vmem:[%s1 + $0xc0] sm:$0xff]
    %v54 = vld [vmem:[%s1 + $0xc8] sm:$0xff]
    %v55 = vld [vmem:[%s1 + $0xd0] sm:$0xff]
    %v56 = vld [vmem:[%s1 + $0xd8] sm:$0xff]
    %v57 = vld [vmem:[%s1 + $0xe0] sm:$0xff]
    %v58 = vld [vmem:[%s1 + $0xe8] sm:$0xff]
    %v59 = vld [vmem:[%s1 + $0xf0] sm:$0xff]
    %v60 = vld [vmem:[%s1 + $0xf8] sm:$0xff]
    %v61 = vld [vmem:[%s2] sm:$0xf]
    %v63 = vlaneseq
    %v64 = vshrl.u32 %v63, 7
    %v65 = vsub.s32 0, %v64
    %v66 = vrot.slane %v61, %v65
    %v67 = vlaneseq
    %v68 = vshrl.u32 %v67, 7
    %v69 = vsub.s32 1, %v68
    %v70 = vrot.slane %v61, %v69
    %v71 = vlaneseq
    %v72 = vshrl.u32 %v71, 7
    %v73 = vsub.s32 2, %v72
    %v74 = vrot.slane %v61, %v73
    %v75 = vlaneseq
    %v76 = vshrl.u32 %v75, 7
    %v77 = vsub.s32 3, %v76
    %v78 = vrot.slane %v61, %v77
    %v115 = vunpack.c.l.b16 %v29
    %v116 = vunpack.c.h.b16 %v29
    %v117 = vunpack.c.l.b16 %v30
    %v118 = vunpack.c.h.b16 %v30
    %v119 = vunpack.c.l.b16 %v31
    %v120 = vunpack.c.h.b16 %v31
    %v121 = vunpack.c.l.b16 %v32
    %v122 = vunpack.c.h.b16 %v32
    %v123 = vunpack.c.l.b16 %v33
    %v124 = vunpack.c.h.b16 %v33
    %v125 = vunpack.c.l.b16 %v34
    %v126 = vunpack.c.h.b16 %v34
    %v127 = vunpack.c.l.b16 %v35
    %v128 = vunpack.c.h.b16 %v35
    %v129 = vunpack.c.l.b16 %v36
    %v130 = vunpack.c.h.b16 %v36
    %v131 = vunpack.c.l.b16 %v37
    %v132 = vunpack.c.h.b16 %v37
    %v133 = vunpack.c.l.b16 %v38
    %v134 = vunpack.c.h.b16 %v38
    %v135 = vunpack.c.l.b16 %v39
    %v136 = vunpack.c.h.b16 %v39
    %v137 = vunpack.c.l.b16 %v40
    %v138 = vunpack.c.h.b16 %v40
    %v139 = vunpack.c.l.b16 %v41
    %v140 = vunpack.c.h.b16 %v41
    %v141 = vunpack.c.l.b16 %v42
    %v142 = vunpack.c.h.b16 %v42
    %v143 = vunpack.c.l.b16 %v43
    %v144 = vunpack.c.h.b16 %v43
    %v145 = vunpack.c.l.b16 %v44
    %v146 = vunpack.c.h.b16 %v44
    %v147 = vunpack.c.l.b16 %v45
    %v148 = vunpack.c.h.b16 %v45
    %v149 = vunpack.c.l.b16 %v46
    %v150 = vunpack.c.h.b16 %v46
    %v151 = vunpack.c.l.b16 %v47
    %v152 = vunpack.c.h.b16 %v47
    %v153 = vunpack.c.l.b16 %v48
    %v154 = vunpack.c.h.b16 %v48
    %v155 = vunpack.c.l.b16 %v49
    %v156 = vunpack.c.h.b16 %v49
    %v157 = vunpack.c.l.b16 %v50
    %v158 = vunpack.c.h.b16 %v50
    %v159 = vunpack.c.l.b16 %v51
    %v160 = vunpack.c.h.b16 %v51
    %v161 = vunpack.c.l.b16 %v52
    %v162 = vunpack.c.h.b16 %v52
    %v163 = vunpack.c.l.b16 %v53
    %v164 = vunpack.c.h.b16 %v53
    %v165 = vunpack.c.l.b16 %v54
    %v166 = vunpack.c.h.b16 %v54
    %v167 = vunpack.c.l.b16 %v55
    %v168 = vunpack.c.h.b16 %v55
    %v169 = vunpack.c.l.b16 %v56
    %v170 = vunpack.c.h.b16 %v56
    %v171 = vunpack.c.l.b16 %v57
    %v172 = vunpack.c.h.b16 %v57
    %v173 = vunpack.c.l.b16 %v58
    %v174 = vunpack.c.h.b16 %v58
    %v175 = vunpack.c.l.b16 %v59
    %v176 = vunpack.c.h.b16 %v59
    %v177 = vunpack.c.l.b16 %v60
    %v178 = vunpack.c.h.b16 %v60
    %v179 = vpack.c.b16 %v119, %v115
    %v180 = vpack.c.b16 %v120, %v116
    %v181 = vpack.c.b16 %v121, %v117
    %v182 = vpack.c.b16 %v122, %v118
    %v183 = vpack.c.b16 %v127, %v123
    %v184 = vpack.c.b16 %v128, %v124
    %v185 = vpack.c.b16 %v129, %v125
    %v186 = vpack.c.b16 %v130, %v126
    %v187 = vpack.c.b16 %v135, %v131
    %v188 = vpack.c.b16 %v136, %v132
    %v189 = vpack.c.b16 %v137, %v133
    %v190 = vpack.c.b16 %v138, %v134
    %v191 = vpack.c.b16 %v143, %v139
    %v192 = vpack.c.b16 %v144, %v140
    %v193 = vpack.c.b16 %v145, %v141
    %v194 = vpack.c.b16 %v146, %v142
    %v195 = vpack.c.b16 %v151, %v147
    %v196 = vpack.c.b16 %v152, %v148
    %v197 = vpack.c.b16 %v153, %v149
    %v198 = vpack.c.b16 %v154, %v150
    %v199 = vpack.c.b16 %v159, %v155
    %v200 = vpack.c.b16 %v160, %v156
    %v201 = vpack.c.b16 %v161, %v157
    %v202 = vpack.c.b16 %v162, %v158
    %v203 = vpack.c.b16 %v167, %v163
    %v204 = vpack.c.b16 %v168, %v164
    %v205 = vpack.c.b16 %v169, %v165
    %v206 = vpack.c.b16 %v170, %v166
    %v207 = vpack.c.b16 %v175, %v171
    %v208 = vpack.c.b16 %v176, %v172
    %v209 = vpack.c.b16 %v177, %v173
    %v210 = vpack.c.b16 %v178, %v174
    %243 = vmatprep.subr.bf16.mxu0 %v180
    %244 = vmatpush1.bf16.msra.mxu0 %v179
    %245 = vmatprep.subr.bf16.mxu0 %v184
    %246 = vmatpush1.bf16.msra.mxu0 %v183
    %247 = vmatprep.subr.bf16.mxu0 %v188
    %248 = vmatpush1.bf16.msra.mxu0 %v187
    %249 = vmatprep.subr.bf16.mxu0 %v192
    %250 = vmatpush1.bf16.msra.mxu0 %v191
    %251 = vmatprep.subr.bf16.mxu0 %v196
    %252 = vmatpush1.bf16.msra.mxu0 %v195
    %253 = vmatprep.subr.bf16.mxu0 %v200
    %254 = vmatpush1.bf16.msra.mxu0 %v199
    %255 = vmatprep.subr.bf16.mxu0 %v204
    %256 = vmatpush1.bf16.msra.mxu0 %v203
    %257 = vmatprep.subr.bf16.mxu0 %v208
    %258 = vmatpush1.bf16.msra.mxu0 %v207
    %259 = vmatprep.subr.bf16.mxu0 0
    %260 = vmatpush1.bf16.msra.mxu0 0
    %261 = vmatprep.subr.bf16.mxu0 0
    %262 = vmatpush1.bf16.msra.mxu0 0
    %263 = vmatprep.subr.bf16.mxu0 0
    %264 = vmatpush1.bf16.msra.mxu0 0
    %265 = vmatprep.subr.bf16.mxu0 0
    %266 = vmatpush1.bf16.msra.mxu0 0
    %267 = vmatprep.subr.bf16.mxu0 0
    %268 = vmatpush1.bf16.msra.mxu0 0
    %269 = vmatprep.subr.bf16.mxu0 0
    %270 = vmatpush1.bf16.msra.mxu0 0
    %271 = vmatprep.subr.bf16.mxu0 0
    %272 = vmatpush1.bf16.msra.mxu0 0
    %273 = vmatprep.subr.bf16.mxu0 0
    %274 = vmatpush1.bf16.msra.mxu0 0
    %275 = vmatprep.mubr.bf16.mxu0 0
    %276 = vmatmul.mubr.bf16.gmra.mrb[0].mxu0 %v28
    %v277 = vpop.f32.mrb[0].mxu0
    %v278 = vadd.f32 %v66, %v277
    %v279 = vpop.f32.mrb[0].mxu0
    %v280 = vadd.f32 %v70, %v279
    %v281 = vpop.f32.mrb[0].mxu0
    %v282 = vpop.f32.mrb[0].mxu0
    %283 = vdwg.mxu0
    %284 = vmatprep.subr.bf16.mxu0 %v182
    %285 = vmatpush1.bf16.msra.mxu0 %v181
    %286 = vmatprep.subr.bf16.mxu0 %v186
    %287 = vmatpush1.bf16.msra.mxu0 %v185
    %288 = vmatprep.subr.bf16.mxu0 %v190
    %289 = vmatpush1.bf16.msra.mxu0 %v189
    %290 = vmatprep.subr.bf16.mxu0 %v194
    %291 = vmatpush1.bf16.msra.mxu0 %v193
    %292 = vmatprep.subr.bf16.mxu0 %v198
    %293 = vmatpush1.bf16.msra.mxu0 %v197
    %294 = vmatprep.subr.bf16.mxu0 %v202
    %295 = vmatpush1.bf16.msra.mxu0 %v201
    %296 = vmatprep.subr.bf16.mxu0 %v206
    %297 = vmatpush1.bf16.msra.mxu0 %v205
    %298 = vmatprep.subr.bf16.mxu0 %v210
    %299 = vmatpush1.bf16.msra.mxu0 %v209
    %300 = vmatprep.subr.bf16.mxu0 0
    %301 = vmatpush1.bf16.msra.mxu0 0
    %302 = vmatprep.subr.bf16.mxu0 0
    %303 = vmatpush1.bf16.msra.mxu0 0
    %304 = vmatprep.subr.bf16.mxu0 0
    %305 = vmatpush1.bf16.msra.mxu0 0
    %306 = vmatprep.subr.bf16.mxu0 0
    %307 = vmatpush1.bf16.msra.mxu0 0
    %308 = vmatprep.subr.bf16.mxu0 0
    %309 = vmatpush1.bf16.msra.mxu0 0
    %310 = vmatprep.subr.bf16.mxu0 0
    %311 = vmatpush1.bf16.msra.mxu0 0
    %312 = vmatprep.subr.bf16.mxu0 0
    %313 = vmatpush1.bf16.msra.mxu0 0
    %314 = vmatprep.subr.bf16.mxu0 0
    %315 = vmatpush1.bf16.msra.mxu0 0
    %316 = vmatprep.mubr.bf16.mxu0 0
    %317 = vmatmul.mubr.bf16.gmra.mrb[0].mxu0 %v28
    %v318 = vpop.f32.mrb[0].mxu0
    %v319 = vadd.f32 %v74, %v318
    %v320 = vpop.f32.mrb[0].mxu0
    %v321 = vadd.f32 %v78, %v320
    %v322 = vpop.f32.mrb[0].mxu0
    %v323 = vpop.f32.mrb[0].mxu0
    %324 = vdwg.mxu0
    %v325 = vmax.f32 %v278, 0.0
    %v326 = vmax.f32 %v280, 0.0
    %v327 = vmax.f32 %v319, 0.0
    %v328 = vmax.f32 %v321, 0.0
    %v329 = vpack.c.bf16 %v325, %v325
    %v330 = vpack.c.bf16 %v326, %v326
    %v331 = vpack.c.bf16 %v327, %v327
    %v332 = vpack.c.bf16 %v328, %v328
    %v333 = vld [vmem:[%s3] sm:$0xf]
    %v334 = vld [vmem:[%s3 + $0x4] sm:$0xf]
    %v335 = vld [vmem:[%s3 + $0x8] sm:$0xf]
    %v336 = vld [vmem:[%s3 + $0xc] sm:$0xf]
    %v337 = vld [vmem:[%s3 + $0x10] sm:$0xf]
    %v338 = vld [vmem:[%s3 + $0x14] sm:$0xf]
    %v339 = vld [vmem:[%s3 + $0x18] sm:$0xf]
    %v340 = vld [vmem:[%s3 + $0x1c] sm:$0xf]
    %v341 = vld [vmem:[%s3 + $0x20] sm:$0xf]
    %v342 = vld [vmem:[%s3 + $0x24] sm:$0xf]
    %v343 = vld [vmem:[%s3 + $0x28] sm:$0xf]
    %v344 = vld [vmem:[%s3 + $0x2c] sm:$0xf]
    %v345 = vld [vmem:[%s3 + $0x30] sm:$0xf]
    %v346 = vld [vmem:[%s3 + $0x34] sm:$0xf]
    %v347 = vld [vmem:[%s3 + $0x38] sm:$0xf]
    %v348 = vld [vmem:[%s3 + $0x3c] sm:$0xf]
    %v349 = vld [vmem:[%s3 + $0x40] sm:$0xf]
    %v350 = vld [vmem:[%s3 + $0x44] sm:$0xf]
    %v351 = vld [vmem:[%s3 + $0x48] sm:$0xf]
    %v352 = vld [vmem:[%s3 + $0x4c] sm:$0xf]
    %v353 = vld [vmem:[%s3 + $0x50] sm:$0xf]
    %v354 = vld [vmem:[%s3 + $0x54] sm:$0xf]
    %v355 = vld [vmem:[%s3 + $0x58] sm:$0xf]
    %v356 = vld [vmem:[%s3 + $0x5c] sm:$0xf]
    %v357 = vld [vmem:[%s3 + $0x60] sm:$0xf]
    %v358 = vld [vmem:[%s3 + $0x64] sm:$0xf]
    %v359 = vld [vmem:[%s3 + $0x68] sm:$0xf]
    %v360 = vld [vmem:[%s3 + $0x6c] sm:$0xf]
    %v361 = vld [vmem:[%s3 + $0x70] sm:$0xf]
    %v362 = vld [vmem:[%s3 + $0x74] sm:$0xf]
    %v363 = vld [vmem:[%s3 + $0x78] sm:$0xf]
    %v364 = vld [vmem:[%s3 + $0x7c] sm:$0xf]
    %v365 = vld [vmem:[%s3 + $0x80] sm:$0xf]
    %v366 = vld [vmem:[%s3 + $0x84] sm:$0xf]
    %v367 = vld [vmem:[%s3 + $0x88] sm:$0xf]
    %v368 = vld [vmem:[%s3 + $0x8c] sm:$0xf]
    %v369 = vld [vmem:[%s3 + $0x90] sm:$0xf]
    %v370 = vld [vmem:[%s3 + $0x94] sm:$0xf]
    %v371 = vld [vmem:[%s3 + $0x98] sm:$0xf]
    %v372 = vld [vmem:[%s3 + $0x9c] sm:$0xf]
    %v373 = vld [vmem:[%s3 + $0xa0] sm:$0xf]
    %v374 = vld [vmem:[%s3 + $0xa4] sm:$0xf]
    %v375 = vld [vmem:[%s3 + $0xa8] sm:$0xf]
    %v376 = vld [vmem:[%s3 + $0xac] sm:$0xf]
    %v377 = vld [vmem:[%s3 + $0xb0] sm:$0xf]
    %v378 = vld [vmem:[%s3 + $0xb4] sm:$0xf]
    %v379 = vld [vmem:[%s3 + $0xb8] sm:$0xf]
    %v380 = vld [vmem:[%s3 + $0xbc] sm:$0xf]
    %v381 = vld [vmem:[%s3 + $0xc0] sm:$0xf]
    %v382 = vld [vmem:[%s3 + $0xc4] sm:$0xf]
    %v383 = vld [vmem:[%s3 + $0xc8] sm:$0xf]
    %v384 = vld [vmem:[%s3 + $0xcc] sm:$0xf]
    %v385 = vld [vmem:[%s3 + $0xd0] sm:$0xf]
    %v386 = vld [vmem:[%s3 + $0xd4] sm:$0xf]
    %v387 = vld [vmem:[%s3 + $0xd8] sm:$0xf]
    %v388 = vld [vmem:[%s3 + $0xdc] sm:$0xf]
    %v389 = vld [vmem:[%s3 + $0xe0] sm:$0xf]
    %v390 = vld [vmem:[%s3 + $0xe4] sm:$0xf]
    %v391 = vld [vmem:[%s3 + $0xe8] sm:$0xf]
    %v392 = vld [vmem:[%s3 + $0xec] sm:$0xf]
    %v393 = vld [vmem:[%s3 + $0xf0] sm:$0xf]
    %v394 = vld [vmem:[%s3 + $0xf4] sm:$0xf]
    %v395 = vld [vmem:[%s3 + $0xf8] sm:$0xf]
    %v396 = vld [vmem:[%s3 + $0xfc] sm:$0xf]
    %v397 = vld [vmem:[%s4] sm:$0x1]
    %v399 = vlaneseq
    %v400 = vshrl.u32 %v399, 7
    %v401 = vsub.s32 0, %v400
    %v402 = vrot.slane %v397, %v401
    %v468 = vunpack.c.l.b16 %v333
    %v469 = vunpack.c.l.b16 %v334
    %v470 = vunpack.c.l.b16 %v335
    %v471 = vunpack.c.l.b16 %v336
    %v472 = vunpack.c.l.b16 %v337
    %v473 = vunpack.c.l.b16 %v338
    %v474 = vunpack.c.l.b16 %v339
    %v475 = vunpack.c.l.b16 %v340
    %v476 = vunpack.c.l.b16 %v341
    %v477 = vunpack.c.l.b16 %v342
    %v478 = vunpack.c.l.b16 %v343
    %v479 = vunpack.c.l.b16 %v344
    %v480 = vunpack.c.l.b16 %v345
    %v481 = vunpack.c.l.b16 %v346
    %v482 = vunpack.c.l.b16 %v347
    %v483 = vunpack.c.l.b16 %v348
    %v484 = vunpack.c.l.b16 %v349
    %v485 = vunpack.c.l.b16 %v350
    %v486 = vunpack.c.l.b16 %v351
    %v487 = vunpack.c.l.b16 %v352
    %v488 = vunpack.c.l.b16 %v353
    %v489 = vunpack.c.l.b16 %v354
    %v490 = vunpack.c.l.b16 %v355
    %v491 = vunpack.c.l.b16 %v356
    %v492 = vunpack.c.l.b16 %v357
    %v493 = vunpack.c.l.b16 %v358
    %v494 = vunpack.c.l.b16 %v359
    %v495 = vunpack.c.l.b16 %v360
    %v496 = vunpack.c.l.b16 %v361
    %v497 = vunpack.c.l.b16 %v362
    %v498 = vunpack.c.l.b16 %v363
    %v499 = vunpack.c.l.b16 %v364
    %v500 = vunpack.c.l.b16 %v365
    %v501 = vunpack.c.l.b16 %v366
    %v502 = vunpack.c.l.b16 %v367
    %v503 = vunpack.c.l.b16 %v368
    %v504 = vunpack.c.l.b16 %v369
    %v505 = vunpack.c.l.b16 %v370
    %v506 = vunpack.c.l.b16 %v371
    %v507 = vunpack.c.l.b16 %v372
    %v508 = vunpack.c.l.b16 %v373
    %v509 = vunpack.c.l.b16 %v374
    %v510 = vunpack.c.l.b16 %v375
    %v511 = vunpack.c.l.b16 %v376
    %v512 = vunpack.c.l.b16 %v377
    %v513 = vunpack.c.l.b16 %v378
    %v514 = vunpack.c.l.b16 %v379
    %v515 = vunpack.c.l.b16 %v380
    %v516 = vunpack.c.l.b16 %v381
    %v517 = vunpack.c.l.b16 %v382
    %v518 = vunpack.c.l.b16 %v383
    %v519 = vunpack.c.l.b16 %v384
    %v520 = vunpack.c.l.b16 %v385
    %v521 = vunpack.c.l.b16 %v386
    %v522 = vunpack.c.l.b16 %v387
    %v523 = vunpack.c.l.b16 %v388
    %v524 = vunpack.c.l.b16 %v389
    %v525 = vunpack.c.l.b16 %v390
    %v526 = vunpack.c.l.b16 %v391
    %v527 = vunpack.c.l.b16 %v392
    %v528 = vunpack.c.l.b16 %v393
    %v529 = vunpack.c.l.b16 %v394
    %v530 = vunpack.c.l.b16 %v395
    %v531 = vunpack.c.l.b16 %v396
    %v532 = vpack.c.b16 %v469, %v468
    %v533 = vpack.c.b16 %v471, %v470
    %v534 = vpack.c.b16 %v473, %v472
    %v535 = vpack.c.b16 %v475, %v474
    %v536 = vpack.c.b16 %v477, %v476
    %v537 = vpack.c.b16 %v479, %v478
    %v538 = vpack.c.b16 %v481, %v480
    %v539 = vpack.c.b16 %v483, %v482
    %v540 = vpack.c.b16 %v485, %v484
    %v541 = vpack.c.b16 %v487, %v486
    %v542 = vpack.c.b16 %v489, %v488
    %v543 = vpack.c.b16 %v491, %v490
    %v544 = vpack.c.b16 %v493, %v492
    %v545 = vpack.c.b16 %v495, %v494
    %v546 = vpack.c.b16 %v497, %v496
    %v547 = vpack.c.b16 %v499, %v498
    %v548 = vpack.c.b16 %v501, %v500
    %v549 = vpack.c.b16 %v503, %v502
    %v550 = vpack.c.b16 %v505, %v504
    %v551 = vpack.c.b16 %v507, %v506
    %v552 = vpack.c.b16 %v509, %v508
    %v553 = vpack.c.b16 %v511, %v510
    %v554 = vpack.c.b16 %v513, %v512
    %v555 = vpack.c.b16 %v515, %v514
    %v556 = vpack.c.b16 %v517, %v516
    %v557 = vpack.c.b16 %v519, %v518
    %v558 = vpack.c.b16 %v521, %v520
    %v559 = vpack.c.b16 %v523, %v522
    %v560 = vpack.c.b16 %v525, %v524
    %v561 = vpack.c.b16 %v527, %v526
    %v562 = vpack.c.b16 %v529, %v528
    %v563 = vpack.c.b16 %v531, %v530
    %596 = vmatprep.subr.bf16.mxu0 0
    %597 = vmatpush1.bf16.msra.mxu0 %v532
    %598 = vmatprep.subr.bf16.mxu0 0
    %599 = vmatpush1.bf16.msra.mxu0 %v533
    %600 = vmatprep.subr.bf16.mxu0 0
    %601 = vmatpush1.bf16.msra.mxu0 %v534
    %602 = vmatprep.subr.bf16.mxu0 0
    %603 = vmatpush1.bf16.msra.mxu0 %v535
    %604 = vmatprep.subr.bf16.mxu0 0
    %605 = vmatpush1.bf16.msra.mxu0 %v536
    %606 = vmatprep.subr.bf16.mxu0 0
    %607 = vmatpush1.bf16.msra.mxu0 %v537
    %608 = vmatprep.subr.bf16.mxu0 0
    %609 = vmatpush1.bf16.msra.mxu0 %v538
    %610 = vmatprep.subr.bf16.mxu0 0
    %611 = vmatpush1.bf16.msra.mxu0 %v539
    %612 = vmatprep.subr.bf16.mxu0 0
    %613 = vmatpush1.bf16.msra.mxu0 %v540
    %614 = vmatprep.subr.bf16.mxu0 0
    %615 = vmatpush1.bf16.msra.mxu0 %v541
    %616 = vmatprep.subr.bf16.mxu0 0
    %617 = vmatpush1.bf16.msra.mxu0 %v542
    %618 = vmatprep.subr.bf16.mxu0 0
    %619 = vmatpush1.bf16.msra.mxu0 %v543
    %620 = vmatprep.subr.bf16.mxu0 0
    %621 = vmatpush1.bf16.msra.mxu0 %v544
    %622 = vmatprep.subr.bf16.mxu0 0
    %623 = vmatpush1.bf16.msra.mxu0 %v545
    %624 = vmatprep.subr.bf16.mxu0 0
    %625 = vmatpush1.bf16.msra.mxu0 %v546
    %626 = vmatprep.subr.bf16.mxu0 0
    %627 = vmatpush1.bf16.msra.mxu0 %v547
    %628 = vmatprep.mubr.bf16.mxu0 %v330
    %629 = vmatmul.mubr.bf16.gmra.mrb[0].mxu0 %v329
    %v630 = vpop.f32.mrb[0].mxu0
    %v631 = vadd.f32 %v402, %v630
    %v632 = vpop.f32.mrb[0].mxu0
    %v633 = vpop.f32.mrb[0].mxu0
    %v634 = vpop.f32.mrb[0].mxu0
    %635 = vdwg.mxu0
    %636 = vmatprep.subr.bf16.mxu0 0
    %637 = vmatpush1.bf16.msra.mxu0 %v548
    %638 = vmatprep.subr.bf16.mxu0 0
    %639 = vmatpush1.bf16.msra.mxu0 %v549
    %640 = vmatprep.subr.bf16.mxu0 0
    %641 = vmatpush1.bf16.msra.mxu0 %v550
    %642 = vmatprep.subr.bf16.mxu0 0
    %643 = vmatpush1.bf16.msra.mxu0 %v551
    %644 = vmatprep.subr.bf16.mxu0 0
    %645 = vmatpush1.bf16.msra.mxu0 %v552
    %646 = vmatprep.subr.bf16.mxu0 0
    %647 = vmatpush1.bf16.msra.mxu0 %v553
    %648 = vmatprep.subr.bf16.mxu0 0
    %649 = vmatpush1.bf16.msra.mxu0 %v554
    %650 = vmatprep.subr.bf16.mxu0 0
    %651 = vmatpush1.bf16.msra.mxu0 %v555
    %652 = vmatprep.subr.bf16.mxu0 0
    %653 = vmatpush1.bf16.msra.mxu0 %v556
    %654 = vmatprep.subr.bf16.mxu0 0
    %655 = vmatpush1.bf16.msra.mxu0 %v557
    %656 = vmatprep.subr.bf16.mxu0 0
    %657 = vmatpush1.bf16.msra.mxu0 %v558
    %658 = vmatprep.subr.bf16.mxu0 0
    %659 = vmatpush1.bf16.msra.mxu0 %v559
    %660 = vmatprep.subr.bf16.mxu0 0
    %661 = vmatpush1.bf16.msra.mxu0 %v560
    %662 = vmatprep.subr.bf16.mxu0 0
    %663 = vmatpush1.bf16.msra.mxu0 %v561
    %664 = vmatprep.subr.bf16.mxu0 0
    %665 = vmatpush1.bf16.msra.mxu0 %v562
    %666 = vmatprep.subr.bf16.mxu0 0
    %667 = vmatpush1.bf16.msra.mxu0 %v563
    %668 = vmatprep.mubr.bf16.mxu0 %v332
    %669 = vmatmul.mubr.bf16.gmra.mrb[0].mxu0 %v331
    %v670 = vpop.f32.mrb[0].mxu0
    %v671 = vadd.f32 %v631, %v670
    %v672 = vpop.f32.mrb[0].mxu0
    %v673 = vpop.f32.mrb[0].mxu0
    %v674 = vpop.f32.mrb[0].mxu0
    %675 = vdwg.mxu0
    %v676 = vmax.f32 %v671, 0.0
    %v677 = vpack.c.bf16 %v676, %v676
    %v678 = vld [vmem:[%s5] sm:$0xf]
    %v679 = vld [vmem:[%s5 + $0x4] sm:$0xf]
    %v680 = vld [vmem:[%s5 + $0x8] sm:$0xf]
    %v681 = vld [vmem:[%s5 + $0xc] sm:$0xf]
    %v682 = vld [vmem:[%s5 + $0x10] sm:$0xf]
    %v683 = vld [vmem:[%s5 + $0x14] sm:$0xf]
    %v684 = vld [vmem:[%s5 + $0x18] sm:$0xf]
    %v685 = vld [vmem:[%s5 + $0x1c] sm:$0xf]
    %v686 = vld [vmem:[%s5 + $0x20] sm:$0xf]
    %v687 = vld [vmem:[%s5 + $0x24] sm:$0xf]
    %v688 = vld [vmem:[%s5 + $0x28] sm:$0xf]
    %v689 = vld [vmem:[%s5 + $0x2c] sm:$0xf]
    %v690 = vld [vmem:[%s5 + $0x30] sm:$0xf]
    %v691 = vld [vmem:[%s5 + $0x34] sm:$0xf]
    %v692 = vld [vmem:[%s5 + $0x38] sm:$0xf]
    %v693 = vld [vmem:[%s5 + $0x3c] sm:$0xf]
    %v694 = vld [vmem:[%s6] sm:$0x1]
    %v696 = vlaneseq
    %v697 = vshrl.u32 %v696, 7
    %v698 = vsub.s32 0, %v697
    %v699 = vrot.slane %v694, %v698
    %v717 = vunpack.c.l.b16 %v678
    %v718 = vunpack.c.l.b16 %v679
    %v719 = vunpack.c.l.b16 %v680
    %v720 = vunpack.c.l.b16 %v681
    %v721 = vunpack.c.l.b16 %v682
    %v722 = vunpack.c.l.b16 %v683
    %v723 = vunpack.c.l.b16 %v684
    %v724 = vunpack.c.l.b16 %v685
    %v725 = vunpack.c.l.b16 %v686
    %v726 = vunpack.c.l.b16 %v687
    %v727 = vunpack.c.l.b16 %v688
    %v728 = vunpack.c.l.b16 %v689
    %v729 = vunpack.c.l.b16 %v690
    %v730 = vunpack.c.l.b16 %v691
    %v731 = vunpack.c.l.b16 %v692
    %v732 = vunpack.c.l.b16 %v693
    %v733 = vpack.c.b16 %v718, %v717
    %v734 = vpack.c.b16 %v720, %v719
    %v735 = vpack.c.b16 %v722, %v721
    %v736 = vpack.c.b16 %v724, %v723
    %v737 = vpack.c.b16 %v726, %v725
    %v738 = vpack.c.b16 %v728, %v727
    %v739 = vpack.c.b16 %v730, %v729
    %v740 = vpack.c.b16 %v732, %v731
    %749 = vmatprep.subr.bf16.mxu0 0
    %750 = vmatpush1.bf16.msra.mxu0 %v733
    %751 = vmatprep.subr.bf16.mxu0 0
    %752 = vmatpush1.bf16.msra.mxu0 %v734
    %753 = vmatprep.subr.bf16.mxu0 0
    %754 = vmatpush1.bf16.msra.mxu0 %v735
    %755 = vmatprep.subr.bf16.mxu0 0
    %756 = vmatpush1.bf16.msra.mxu0 %v736
    %757 = vmatprep.subr.bf16.mxu0 0
    %758 = vmatpush1.bf16.msra.mxu0 %v737
    %759 = vmatprep.subr.bf16.mxu0 0
    %760 = vmatpush1.bf16.msra.mxu0 %v738
    %761 = vmatprep.subr.bf16.mxu0 0
    %762 = vmatpush1.bf16.msra.mxu0 %v739
    %763 = vmatprep.subr.bf16.mxu0 0
    %764 = vmatpush1.bf16.msra.mxu0 %v740
    %765 = vmatprep.subr.bf16.mxu0 0
    %766 = vmatpush1.bf16.msra.mxu0 0
    %767 = vmatprep.subr.bf16.mxu0 0
    %768 = vmatpush1.bf16.msra.mxu0 0
    %769 = vmatprep.subr.bf16.mxu0 0
    %770 = vmatpush1.bf16.msra.mxu0 0
    %771 = vmatprep.subr.bf16.mxu0 0
    %772 = vmatpush1.bf16.msra.mxu0 0
    %773 = vmatprep.subr.bf16.mxu0 0
    %774 = vmatpush1.bf16.msra.mxu0 0
    %775 = vmatprep.subr.bf16.mxu0 0
    %776 = vmatpush1.bf16.msra.mxu0 0
    %777 = vmatprep.subr.bf16.mxu0 0
    %778 = vmatpush1.bf16.msra.mxu0 0
    %779 = vmatprep.subr.bf16.mxu0 0
    %780 = vmatpush1.bf16.msra.mxu0 0
    %781 = vmatprep.mubr.bf16.mxu0 0
    %782 = vmatmul.mubr.bf16.gmra.mrb[0].mxu0 %v677
    %v783 = vpop.f32.mrb[0].mxu0
    %v784 = vadd.f32 %v699, %v783
    %v785 = vpop.f32.mrb[0].mxu0
    %v786 = vpop.f32.mrb[0].mxu0
    %v787 = vpop.f32.mrb[0].mxu0
    %788 = vdwg.mxu0
    %v789 = vmax.f32 %v784, 0.0
    %vm790 = vcmask 146432
    %791 = vst.msk [vmem:[#allocation2] sm:$0xff] %vm790, %v789
    // Predicated region
    $region30: #{_lambda_.5} parent=1 // pred_check
      _
    $region31: #{_lambda_.5} parent=1 // pred_check_branch
      %793 = sbr.rel (0) target = $region33
    $region32: #{_lambda_.5} parent=1 // pred_region
      %s795 = ssub.s32 128, 128
      %796 = vsyncadd [#allocation3], %s795
      %s798 = sshll.u32 [#allocation2], 4
      %s799 = int_to_ptr.vmem [resolvable:$true] %s798
      %801 = dma.vmem_to_hbm [thread:$0]  %s799, 128, %s7, [#allocation3]
    $region33: #{_lambda_.5} parent=1 // pred_fallthru
      _
    // Predicated region
    $region34: #{_lambda_.5} parent=1 // pred_check
      _
    $region35: #{_lambda_.5} parent=1 // pred_check_branch
      %803 = sbr.rel (0) target = $region37
    $region36: #{_lambda_.5} parent=1 // pred_region
      %804 = dma.done [#allocation3], 128
    $region37: #{_lambda_.5} parent=1 // pred_fallthru
      _
    %805 = vsyncpa [#allocation3], 1

</llo_original>
